<compile_context>
chip_gen: v6e
topology: v6e:2x2x1
jax: 0.10.0
libtpu: 0.0.40
codegen_flags: <defaults>
</compile_context>

<pallas_src>
import functools

import jax
import jax.numpy as jnp
from jax.experimental import pallas as pl
from jax.experimental.pallas import tpu as pltpu

EPS = 1e-5


def residual_block_kernel(x_ref, mask_ref,
                          w1_ref, b1_ref, g1_ref, be1_ref,
                          w2_ref, b2_ref, g2_ref, be2_ref,
                          out_ref, ybuf_ref, patch_ref,
                          *, H, W, margin):
    Wp = W + 2
    Cp = out_ref.shape[1]          # channels padded to a multiple of 8
    PADP = out_ref.shape[2]        # lane-padded flattened padded-spatial size
    L = x_ref.shape[2]             # margin + PADP + margin
    inv_hw = 1.0 / float(H * W)

    # (1, PADP): 1.0 at real pixels, 0.0 at the conv halo and lane-pad tail.
    mask = mask_ref[...]

    def conv3x3(load_window, w_ref, b_ref):
        # im2col: stage the 9 shifted (Cp, PADP) windows into VMEM scratch
        # (sublane-aligned stores), then a single MXU matmul with K = 9*Cp.
        for kh in range(3):
            for kw in range(3):
                t = kh * 3 + kw
                off = (kh - 1) * Wp + (kw - 1)
                patch_ref[t * Cp:(t + 1) * Cp, :] = load_window(margin + off)
        out = jnp.dot(w_ref[...], patch_ref[...],
                      preferred_element_type=jnp.float32)     # (Cp, PADP)
        return out + b_ref[...]                               # bias (Cp, 1)

    def instnorm_relu(z, g_ref, be_ref):
        # Per-channel biased statistics over the H*W interior positions only.
        zm = z * mask
        mean = jnp.sum(zm, axis=1, keepdims=True) * inv_hw    # (Cp, 1)
        d = (z - mean) * mask
        var = jnp.sum(d * d, axis=1, keepdims=True) * inv_hw  # (Cp, 1)
        zn = (z - mean) * jax.lax.rsqrt(var + EPS)
        # Trailing *mask re-zeroes halo & tail -> valid zero padding for conv2
        # and a clean residual add.
        return jnp.maximum(g_ref[...] * zn + be_ref[...], 0.0) * mask

    # ---- conv1 -> IN -> ReLU (taps read straight from the margin-padded input)
    y = instnorm_relu(
        conv3x3(lambda s: x_ref[0, :, pl.ds(s, PADP)], w1_ref, b1_ref),
        g1_ref, be1_ref)

    # ---- stage y into the margin buffer; only the halo margins are zeroed
    ybuf_ref[:, 0:margin] = jnp.zeros((Cp, margin), jnp.float32)
    ybuf_ref[:, margin + PADP:L] = jnp.zeros((Cp, L - margin - PADP),
                                             jnp.float32)
    ybuf_ref[:, margin:margin + PADP] = y                     # aligned store

    # ---- conv2 -> IN -> ReLU
    y2 = instnorm_relu(
        conv3x3(lambda s: ybuf_ref[:, pl.ds(s, PADP)], w2_ref, b2_ref),
        g2_ref, be2_ref)

    # ---- residual add in padded-flat coords; wrapper slices out the interior
    out_ref[0] = x_ref[0, :, pl.ds(margin, PADP)] + y2


def residual_block(x_nchw, params):
    """Pallas forward of ResidualBlock. x_nchw: (B, C, H, W) float32."""
    B, C, H, W = x_nchw.shape
    Hp, Wp = H + 2, W + 2
    P = Hp * Wp
    Cp = -(-C // 8) * 8                    # sublane-pad channels
    PADP = -(-P // 128) * 128              # lane-pad flattened padded spatial
    MARGIN = 128                           # aligned shift margin (>= Wp + 1)
    assert Wp + 1 <= MARGIN, "width too large for fixed 128-lane margin"
    L = MARGIN + PADP + MARGIN

    x = x_nchw.astype(jnp.float32)
    # Zero-pad channels (sublanes) + 1-pixel spatial halo, flatten spatial,
    # then add aligned lane margins so conv taps are plain shifted loads.
    xp = jnp.pad(x, ((0, 0), (0, Cp - C), (1, 1), (1, 1)))        # (B,Cp,Hp,Wp)
    xf = jnp.pad(xp.reshape(B, Cp, P),
                 ((0, 0), (0, 0), (MARGIN, L - MARGIN - P)))      # (B,Cp,L)

    # Interior mask in the PADP window (built once, host/XLA side).
    mask = jnp.pad(jnp.ones((H, W), jnp.float32), ((1, 1), (1, 1)))
    mask = jnp.pad(mask.reshape(1, P), ((0, 0), (0, PADP - P)))   # (1, PADP)

    def wmat(w):   # (Cout, Cin, 3, 3) -> (Cp, 9*Cp), column order (kh, kw, ci)
        wt = jnp.transpose(w, (0, 2, 3, 1)).astype(jnp.float32)
        wt = jnp.pad(wt, ((0, Cp - C), (0, 0), (0, 0), (0, Cp - C)))
        return wt.reshape(Cp, 9 * Cp)

    def col(v):    # (C,) -> (Cp, 1)
        return jnp.pad(v.astype(jnp.float32), (0, Cp - C)).reshape(Cp, 1)

    w_spec = pl.BlockSpec((Cp, 9 * Cp), lambda b: (0, 0))
    v_spec = pl.BlockSpec((Cp, 1), lambda b: (0, 0))

    kernel = functools.partial(residual_block_kernel, H=H, W=W, margin=MARGIN)

    out_flat = pl.pallas_call(
        kernel,
        out_shape=jax.ShapeDtypeStruct((B, Cp, PADP), jnp.float32),
        grid=(B,),
        in_specs=[
            pl.BlockSpec((1, Cp, L), lambda b: (b, 0, 0)),
            pl.BlockSpec((1, PADP), lambda b: (0, 0)),
            w_spec, v_spec, v_spec, v_spec,
            w_spec, v_spec, v_spec, v_spec,
        ],
        out_specs=pl.BlockSpec((1, Cp, PADP), lambda b: (b, 0, 0)),
        scratch_shapes=[pltpu.VMEM((Cp, L), jnp.float32),          # y + margins
                        pltpu.VMEM((9 * Cp, PADP), jnp.float32)],  # im2col buf
        compiler_params=pltpu.CompilerParams(
            dimension_semantics=("parallel",)),
    )(xf, mask,
      wmat(params["w1"]), col(params["b1"]), col(params["g1"]),
      col(params["beta1"]),
      wmat(params["w2"]), col(params["b2"]), col(params["g2"]),
      col(params["beta2"]))

    # Drop channel / lane padding, un-flatten, drop the 1-pixel halo -> NCHW.
    out = out_flat[:, :C, :P].reshape(B, C, Hp, Wp)[:, :, 1:H + 1, 1:W + 1]
    return out


def ref_forward(x, params):
    """Pure-JAX reference (NCHW) mirroring the PyTorch module."""
    def conv(z, w, b):
        y = jax.lax.conv_general_dilated(
            z, w, window_strides=(1, 1), padding=((1, 1), (1, 1)),
            dimension_numbers=("NCHW", "OIHW", "NCHW"))
        return y + b[None, :, None, None]

    def inorm(z, g, be):
        mean = z.mean(axis=(2, 3), keepdims=True)
        var = ((z - mean) ** 2).mean(axis=(2, 3), keepdims=True)
        return g[None, :, None, None] * (z - mean) / jnp.sqrt(var + EPS) \
            + be[None, :, None, None]

    y = jax.nn.relu(inorm(conv(x, params["w1"], params["b1"]),
                          params["g1"], params["beta1"]))
    y = jax.nn.relu(inorm(conv(y, params["w2"], params["b2"]),
                          params["g2"], params["beta2"]))
    return x + y


if __name__ == "__main__":
    B, C, H, W = 2, 4, 16, 16
    key = jax.random.PRNGKey(0)
    kx, k1, k2, k3, k4, k5, k6, k7, k8 = jax.random.split(key, 9)

    x = jax.random.normal(kx, (B, C, H, W), jnp.float32)
    params = {
        "w1": 0.1 * jax.random.normal(k1, (C, C, 3, 3), jnp.float32),
        "b1": 0.1 * jax.random.normal(k2, (C,), jnp.float32),
        "g1": 1.0 + 0.1 * jax.random.normal(k3, (C,), jnp.float32),
        "beta1": 0.1 * jax.random.normal(k4, (C,), jnp.float32),
        "w2": 0.1 * jax.random.normal(k5, (C, C, 3, 3), jnp.float32),
        "b2": 0.1 * jax.random.normal(k6, (C,), jnp.float32),
        "g2": 1.0 + 0.1 * jax.random.normal(k7, (C,), jnp.float32),
        "beta2": 0.1 * jax.random.normal(k8, (C,), jnp.float32),
    }

    out = residual_block(x, params)
    out = jax.block_until_ready(out)

    ref = jax.block_until_ready(ref_forward(x, params))
    assert out.shape == (B, C, H, W)
    assert jnp.max(jnp.abs(out - ref)) < 1e-4, "mismatch vs JAX reference"

    print("KERNEL_OK")
</pallas_src>

<mosaic_0001>
module attributes {stable_mosaic.version = 11 : i64} {
  func.func @residual_block_kernel(%arg0: i32, %arg1: memref<1x8x640xf32, #tpu.memory_space<vmem>>, %arg2: memref<1x384xf32, #tpu.memory_space<vmem>>, %arg3: memref<8x72xf32, #tpu.memory_space<vmem>>, %arg4: memref<8x1xf32, #tpu.memory_space<vmem>>, %arg5: memref<8x1xf32, #tpu.memory_space<vmem>>, %arg6: memref<8x1xf32, #tpu.memory_space<vmem>>, %arg7: memref<8x72xf32, #tpu.memory_space<vmem>>, %arg8: memref<8x1xf32, #tpu.memory_space<vmem>>, %arg9: memref<8x1xf32, #tpu.memory_space<vmem>>, %arg10: memref<8x1xf32, #tpu.memory_space<vmem>>, %arg11: memref<1x8x384xf32, #tpu.memory_space<vmem>>, %arg12: memref<8x640xf32, #tpu.memory_space<vmem>>, %arg13: memref<72x384xf32, #tpu.memory_space<vmem>>) attributes {dimension_semantics = [#tpu.dimension_semantics<parallel>], iteration_bounds = array<i64: 2>, scalar_prefetch = 0 : i64, scratch_operands = 2 : i64, tpu.core_type = #tpu.core_type<tc>, window_params = [{transform_indices = @transform_0, window_bounds = array<i64: 1, 8, 640>}, {pipeline_mode = #tpu.pipeline_mode<synchronous>, transform_indices = @transform_1, window_bounds = array<i64: 1, 384>}, {pipeline_mode = #tpu.pipeline_mode<synchronous>, transform_indices = @transform_2, window_bounds = array<i64: 8, 72>}, {pipeline_mode = #tpu.pipeline_mode<synchronous>, transform_indices = @transform_3, window_bounds = array<i64: 8, 1>}, {pipeline_mode = #tpu.pipeline_mode<synchronous>, transform_indices = @transform_4, window_bounds = array<i64: 8, 1>}, {pipeline_mode = #tpu.pipeline_mode<synchronous>, transform_indices = @transform_5, window_bounds = array<i64: 8, 1>}, {pipeline_mode = #tpu.pipeline_mode<synchronous>, transform_indices = @transform_6, window_bounds = array<i64: 8, 72>}, {pipeline_mode = #tpu.pipeline_mode<synchronous>, transform_indices = @transform_7, window_bounds = array<i64: 8, 1>}, {pipeline_mode = #tpu.pipeline_mode<synchronous>, transform_indices = @transform_8, window_bounds = array<i64: 8, 1>}, {pipeline_mode = #tpu.pipeline_mode<synchronous>, transform_indices = @transform_9, window_bounds = array<i64: 8, 1>}, {transform_indices = @transform_10, window_bounds = array<i64: 1, 8, 384>}]} {
    %c0 = arith.constant 0 : index
    %c0_0 = arith.constant 0 : index
    %0 = vector.load %arg2[%c0, %c0_0] : memref<1x384xf32, #tpu.memory_space<vmem>>, vector<1x384xf32>
    %c0_1 = arith.constant 0 : index
    %c0_2 = arith.constant 0 : index
    %c109 = arith.constant 109 : index
    %1 = vector.load %arg1[%c0_1, %c0_2, %c109] : memref<1x8x640xf32, #tpu.memory_space<vmem>>, vector<1x8x384xf32>
    %2 = vector.shape_cast %1 : vector<1x8x384xf32> to vector<8x384xf32>
    %c0_3 = arith.constant 0 : index
    %c0_4 = arith.constant 0 : index
    %3 = vector.load %arg13[%c0_3, %c0_4] : memref<72x384xf32, #tpu.memory_space<vmem>>, vector<8x384xf32>
    tpu.vector_store %arg13[%c0_3, %c0_4], %2 {strides = array<i32>} : memref<72x384xf32, #tpu.memory_space<vmem>>, vector<8x384xf32>,
    %c0_5 = arith.constant 0 : index
    %c0_6 = arith.constant 0 : index
    %c110 = arith.constant 110 : index
    %4 = vector.load %arg1[%c0_5, %c0_6, %c110] : memref<1x8x640xf32, #tpu.memory_space<vmem>>, vector<1x8x384xf32>
    %5 = vector.shape_cast %4 : vector<1x8x384xf32> to vector<8x384xf32>
    %c8 = arith.constant 8 : index
    %c0_7 = arith.constant 0 : index
    %6 = vector.load %arg13[%c8, %c0_7] : memref<72x384xf32, #tpu.memory_space<vmem>>, vector<8x384xf32>
    tpu.vector_store %arg13[%c8, %c0_7], %5 {strides = array<i32>} : memref<72x384xf32, #tpu.memory_space<vmem>>, vector<8x384xf32>,
    %c0_8 = arith.constant 0 : index
    %c0_9 = arith.constant 0 : index
    %c111 = arith.constant 111 : index
    %7 = vector.load %arg1[%c0_8, %c0_9, %c111] : memref<1x8x640xf32, #tpu.memory_space<vmem>>, vector<1x8x384xf32>
    %8 = vector.shape_cast %7 : vector<1x8x384xf32> to vector<8x384xf32>
    %c16 = arith.constant 16 : index
    %c0_10 = arith.constant 0 : index
    %9 = vector.load %arg13[%c16, %c0_10] : memref<72x384xf32, #tpu.memory_space<vmem>>, vector<8x384xf32>
    tpu.vector_store %arg13[%c16, %c0_10], %8 {strides = array<i32>} : memref<72x384xf32, #tpu.memory_space<vmem>>, vector<8x384xf32>,
    %c0_11 = arith.constant 0 : index
    %c0_12 = arith.constant 0 : index
    %c127 = arith.constant 127 : index
    %10 = vector.load %arg1[%c0_11, %c0_12, %c127] : memref<1x8x640xf32, #tpu.memory_space<vmem>>, vector<1x8x384xf32>
    %11 = vector.shape_cast %10 : vector<1x8x384xf32> to vector<8x384xf32>
    %c24 = arith.constant 24 : index
    %c0_13 = arith.constant 0 : index
    %12 = vector.load %arg13[%c24, %c0_13] : memref<72x384xf32, #tpu.memory_space<vmem>>, vector<8x384xf32>
    tpu.vector_store %arg13[%c24, %c0_13], %11 {strides = array<i32>} : memref<72x384xf32, #tpu.memory_space<vmem>>, vector<8x384xf32>,
    %c0_14 = arith.constant 0 : index
    %c0_15 = arith.constant 0 : index
    %c128 = arith.constant 128 : index
    %13 = vector.load %arg1[%c0_14, %c0_15, %c128] : memref<1x8x640xf32, #tpu.memory_space<vmem>>, vector<1x8x384xf32>
    %14 = vector.shape_cast %13 : vector<1x8x384xf32> to vector<8x384xf32>
    %c32 = arith.constant 32 : index
    %c0_16 = arith.constant 0 : index
    %15 = vector.load %arg13[%c32, %c0_16] : memref<72x384xf32, #tpu.memory_space<vmem>>, vector<8x384xf32>
    tpu.vector_store %arg13[%c32, %c0_16], %14 {strides = array<i32>} : memref<72x384xf32, #tpu.memory_space<vmem>>, vector<8x384xf32>,
    %c0_17 = arith.constant 0 : index
    %c0_18 = arith.constant 0 : index
    %c129 = arith.constant 129 : index
    %16 = vector.load %arg1[%c0_17, %c0_18, %c129] : memref<1x8x640xf32, #tpu.memory_space<vmem>>, vector<1x8x384xf32>
    %17 = vector.shape_cast %16 : vector<1x8x384xf32> to vector<8x384xf32>
    %c40 = arith.constant 40 : index
    %c0_19 = arith.constant 0 : index
    %18 = vector.load %arg13[%c40, %c0_19] : memref<72x384xf32, #tpu.memory_space<vmem>>, vector<8x384xf32>
    tpu.vector_store %arg13[%c40, %c0_19], %17 {strides = array<i32>} : memref<72x384xf32, #tpu.memory_space<vmem>>, vector<8x384xf32>,
    %c0_20 = arith.constant 0 : index
    %c0_21 = arith.constant 0 : index
    %c145 = arith.constant 145 : index
    %19 = vector.load %arg1[%c0_20, %c0_21, %c145] : memref<1x8x640xf32, #tpu.memory_space<vmem>>, vector<1x8x384xf32>
    %20 = vector.shape_cast %19 : vector<1x8x384xf32> to vector<8x384xf32>
    %c48 = arith.constant 48 : index
    %c0_22 = arith.constant 0 : index
    %21 = vector.load %arg13[%c48, %c0_22] : memref<72x384xf32, #tpu.memory_space<vmem>>, vector<8x384xf32>
    tpu.vector_store %arg13[%c48, %c0_22], %20 {strides = array<i32>} : memref<72x384xf32, #tpu.memory_space<vmem>>, vector<8x384xf32>,
    %c0_23 = arith.constant 0 : index
    %c0_24 = arith.constant 0 : index
    %c146 = arith.constant 146 : index
    %22 = vector.load %arg1[%c0_23, %c0_24, %c146] : memref<1x8x640xf32, #tpu.memory_space<vmem>>, vector<1x8x384xf32>
    %23 = vector.shape_cast %22 : vector<1x8x384xf32> to vector<8x384xf32>
    %c56 = arith.constant 56 : index
    %c0_25 = arith.constant 0 : index
    %24 = vector.load %arg13[%c56, %c0_25] : memref<72x384xf32, #tpu.memory_space<vmem>>, vector<8x384xf32>
    tpu.vector_store %arg13[%c56, %c0_25], %23 {strides = array<i32>} : memref<72x384xf32, #tpu.memory_space<vmem>>, vector<8x384xf32>,
    %c0_26 = arith.constant 0 : index
    %c0_27 = arith.constant 0 : index
    %c147 = arith.constant 147 : index
    %25 = vector.load %arg1[%c0_26, %c0_27, %c147] : memref<1x8x640xf32, #tpu.memory_space<vmem>>, vector<1x8x384xf32>
    %26 = vector.shape_cast %25 : vector<1x8x384xf32> to vector<8x384xf32>
    %c64 = arith.constant 64 : index
    %c0_28 = arith.constant 0 : index
    %27 = vector.load %arg13[%c64, %c0_28] : memref<72x384xf32, #tpu.memory_space<vmem>>, vector<8x384xf32>
    tpu.vector_store %arg13[%c64, %c0_28], %26 {strides = array<i32>} : memref<72x384xf32, #tpu.memory_space<vmem>>, vector<8x384xf32>,
    %c0_29 = arith.constant 0 : index
    %c0_30 = arith.constant 0 : index
    %28 = vector.load %arg3[%c0_29, %c0_30] : memref<8x72xf32, #tpu.memory_space<vmem>>, vector<8x72xf32>
    %c0_31 = arith.constant 0 : index
    %c0_32 = arith.constant 0 : index
    %29 = vector.load %arg13[%c0_31, %c0_32] : memref<72x384xf32, #tpu.memory_space<vmem>>, vector<72x384xf32>
    %cst = arith.constant dense<0.000000e+00> : vector<8x384xf32>
    %30 = tpu.matmul %28, %29, %cst {dimension_numbers = #tpu.dot_dimension_numbers<[1], [0], [0], [1], [0, 0, 1, 1], [], []>} : vector<8x72xf32>, vector<72x384xf32>, vector<8x384xf32> -> vector<8x384xf32>
    %c0_33 = arith.constant 0 : index
    %c0_34 = arith.constant 0 : index
    %31 = vector.load %arg4[%c0_33, %c0_34] : memref<8x1xf32, #tpu.memory_space<vmem>>, vector<8x1xf32>
    %32 = vector.broadcast %31 : vector<8x1xf32> to vector<8x384xf32>
    %33 = arith.addf %30, %32 : vector<8x384xf32>
    %34 = vector.broadcast %0 : vector<1x384xf32> to vector<8x384xf32>
    %35 = arith.mulf %33, %34 : vector<8x384xf32>
    %cst_35 = arith.constant dense<0.000000e+00> : vector<8xf32>
    %36 = vector.multi_reduction <add>, %35, %cst_35 [1] : vector<8x384xf32> to vector<8xf32>
    %37 = vector.shape_cast %36 : vector<8xf32> to vector<8x1xf32>
    %cst_36 = arith.constant 3.906250e-03 : f32
    %38 = vector.broadcast %cst_36 : f32 to vector<8x1xf32>
    %39 = arith.mulf %37, %38 : vector<8x1xf32>
    %40 = vector.broadcast %39 : vector<8x1xf32> to vector<8x384xf32>
    %41 = arith.subf %33, %40 : vector<8x384xf32>
    %42 = vector.broadcast %0 : vector<1x384xf32> to vector<8x384xf32>
    %43 = arith.mulf %41, %42 : vector<8x384xf32>
    %44 = arith.mulf %43, %43 : vector<8x384xf32>
    %cst_37 = arith.constant dense<0.000000e+00> : vector<8xf32>
    %45 = vector.multi_reduction <add>, %44, %cst_37 [1] : vector<8x384xf32> to vector<8xf32>
    %46 = vector.shape_cast %45 : vector<8xf32> to vector<8x1xf32>
    %cst_38 = arith.constant 3.906250e-03 : f32
    %47 = vector.broadcast %cst_38 : f32 to vector<8x1xf32>
    %48 = arith.mulf %46, %47 : vector<8x1xf32>
    %49 = vector.broadcast %39 : vector<8x1xf32> to vector<8x384xf32>
    %50 = arith.subf %33, %49 : vector<8x384xf32>
    %cst_39 = arith.constant 9.99999974E-6 : f32
    %51 = vector.broadcast %cst_39 : f32 to vector<8x1xf32>
    %52 = arith.addf %48, %51 : vector<8x1xf32>
    %53 = math.rsqrt %52 : vector<8x1xf32>
    %54 = vector.broadcast %53 : vector<8x1xf32> to vector<8x384xf32>
    %55 = arith.mulf %50, %54 : vector<8x384xf32>
    %c0_40 = arith.constant 0 : index
    %c0_41 = arith.constant 0 : index
    %56 = vector.load %arg5[%c0_40, %c0_41] : memref<8x1xf32, #tpu.memory_space<vmem>>, vector<8x1xf32>
    %57 = vector.broadcast %56 : vector<8x1xf32> to vector<8x384xf32>
    %58 = arith.mulf %57, %55 : vector<8x384xf32>
    %c0_42 = arith.constant 0 : index
    %c0_43 = arith.constant 0 : index
    %59 = vector.load %arg6[%c0_42, %c0_43] : memref<8x1xf32, #tpu.memory_space<vmem>>, vector<8x1xf32>
    %60 = vector.broadcast %59 : vector<8x1xf32> to vector<8x384xf32>
    %61 = arith.addf %58, %60 : vector<8x384xf32>
    %cst_44 = arith.constant 0.000000e+00 : f32
    %62 = vector.broadcast %cst_44 : f32 to vector<8x384xf32>
    %63 = arith.maximumf %61, %62 : vector<8x384xf32>
    %64 = vector.broadcast %0 : vector<1x384xf32> to vector<8x384xf32>
    %65 = arith.mulf %63, %64 : vector<8x384xf32>
    %cst_45 = arith.constant 0.000000e+00 : f32
    %66 = vector.broadcast %cst_45 : f32 to vector<8x128xf32>
    %c0_46 = arith.constant 0 : index
    %c0_47 = arith.constant 0 : index
    %67 = vector.load %arg12[%c0_46, %c0_47] : memref<8x640xf32, #tpu.memory_space<vmem>>, vector<8x128xf32>
    tpu.vector_store %arg12[%c0_46, %c0_47], %66 {strides = array<i32>} : memref<8x640xf32, #tpu.memory_space<vmem>>, vector<8x128xf32>,
    %cst_48 = arith.constant 0.000000e+00 : f32
    %68 = vector.broadcast %cst_48 : f32 to vector<8x128xf32>
    %c0_49 = arith.constant 0 : index
    %c512 = arith.constant 512 : index
    %69 = vector.load %arg12[%c0_49, %c512] : memref<8x640xf32, #tpu.memory_space<vmem>>, vector<8x128xf32>
    tpu.vector_store %arg12[%c0_49, %c512], %68 {strides = array<i32>} : memref<8x640xf32, #tpu.memory_space<vmem>>, vector<8x128xf32>,
    %c0_50 = arith.constant 0 : index
    %c128_51 = arith.constant 128 : index
    %70 = vector.load %arg12[%c0_50, %c128_51] : memref<8x640xf32, #tpu.memory_space<vmem>>, vector<8x384xf32>
    tpu.vector_store %arg12[%c0_50, %c128_51], %65 {strides = array<i32>} : memref<8x640xf32, #tpu.memory_space<vmem>>, vector<8x384xf32>,
    %c0_52 = arith.constant 0 : index
    %c109_53 = arith.constant 109 : index
    %71 = vector.load %arg12[%c0_52, %c109_53] : memref<8x640xf32, #tpu.memory_space<vmem>>, vector<8x384xf32>
    %c0_54 = arith.constant 0 : index
    %c0_55 = arith.constant 0 : index
    %72 = vector.load %arg13[%c0_54, %c0_55] : memref<72x384xf32, #tpu.memory_space<vmem>>, vector<8x384xf32>
    tpu.vector_store %arg13[%c0_54, %c0_55], %71 {strides = array<i32>} : memref<72x384xf32, #tpu.memory_space<vmem>>, vector<8x384xf32>,
    %c0_56 = arith.constant 0 : index
    %c110_57 = arith.constant 110 : index
    %73 = vector.load %arg12[%c0_56, %c110_57] : memref<8x640xf32, #tpu.memory_space<vmem>>, vector<8x384xf32>
    %c8_58 = arith.constant 8 : index
    %c0_59 = arith.constant 0 : index
    %74 = vector.load %arg13[%c8_58, %c0_59] : memref<72x384xf32, #tpu.memory_space<vmem>>, vector<8x384xf32>
    tpu.vector_store %arg13[%c8_58, %c0_59], %73 {strides = array<i32>} : memref<72x384xf32, #tpu.memory_space<vmem>>, vector<8x384xf32>,
    %c0_60 = arith.constant 0 : index
    %c111_61 = arith.constant 111 : index
    %75 = vector.load %arg12[%c0_60, %c111_61] : memref<8x640xf32, #tpu.memory_space<vmem>>, vector<8x384xf32>
    %c16_62 = arith.constant 16 : index
    %c0_63 = arith.constant 0 : index
    %76 = vector.load %arg13[%c16_62, %c0_63] : memref<72x384xf32, #tpu.memory_space<vmem>>, vector<8x384xf32>
    tpu.vector_store %arg13[%c16_62, %c0_63], %75 {strides = array<i32>} : memref<72x384xf32, #tpu.memory_space<vmem>>, vector<8x384xf32>,
    %c0_64 = arith.constant 0 : index
    %c127_65 = arith.constant 127 : index
    %77 = vector.load %arg12[%c0_64, %c127_65] : memref<8x640xf32, #tpu.memory_space<vmem>>, vector<8x384xf32>
    %c24_66 = arith.constant 24 : index
    %c0_67 = arith.constant 0 : index
    %78 = vector.load %arg13[%c24_66, %c0_67] : memref<72x384xf32, #tpu.memory_space<vmem>>, vector<8x384xf32>
    tpu.vector_store %arg13[%c24_66, %c0_67], %77 {strides = array<i32>} : memref<72x384xf32, #tpu.memory_space<vmem>>, vector<8x384xf32>,
    %c0_68 = arith.constant 0 : index
    %c128_69 = arith.constant 128 : index
    %79 = vector.load %arg12[%c0_68, %c128_69] : memref<8x640xf32, #tpu.memory_space<vmem>>, vector<8x384xf32>
    %c32_70 = arith.constant 32 : index
    %c0_71 = arith.constant 0 : index
    %80 = vector.load %arg13[%c32_70, %c0_71] : memref<72x384xf32, #tpu.memory_space<vmem>>, vector<8x384xf32>
    tpu.vector_store %arg13[%c32_70, %c0_71], %79 {strides = array<i32>} : memref<72x384xf32, #tpu.memory_space<vmem>>, vector<8x384xf32>,
    %c0_72 = arith.constant 0 : index
    %c129_73 = arith.constant 129 : index
    %81 = vector.load %arg12[%c0_72, %c129_73] : memref<8x640xf32, #tpu.memory_space<vmem>>, vector<8x384xf32>
    %c40_74 = arith.constant 40 : index
    %c0_75 = arith.constant 0 : index
    %82 = vector.load %arg13[%c40_74, %c0_75] : memref<72x384xf32, #tpu.memory_space<vmem>>, vector<8x384xf32>
    tpu.vector_store %arg13[%c40_74, %c0_75], %81 {strides = array<i32>} : memref<72x384xf32, #tpu.memory_space<vmem>>, vector<8x384xf32>,
    %c0_76 = arith.constant 0 : index
    %c145_77 = arith.constant 145 : index
    %83 = vector.load %arg12[%c0_76, %c145_77] : memref<8x640xf32, #tpu.memory_space<vmem>>, vector<8x384xf32>
    %c48_78 = arith.constant 48 : index
    %c0_79 = arith.constant 0 : index
    %84 = vector.load %arg13[%c48_78, %c0_79] : memref<72x384xf32, #tpu.memory_space<vmem>>, vector<8x384xf32>
    tpu.vector_store %arg13[%c48_78, %c0_79], %83 {strides = array<i32>} : memref<72x384xf32, #tpu.memory_space<vmem>>, vector<8x384xf32>,
    %c0_80 = arith.constant 0 : index
    %c146_81 = arith.constant 146 : index
    %85 = vector.load %arg12[%c0_80, %c146_81] : memref<8x640xf32, #tpu.memory_space<vmem>>, vector<8x384xf32>
    %c56_82 = arith.constant 56 : index
    %c0_83 = arith.constant 0 : index
    %86 = vector.load %arg13[%c56_82, %c0_83] : memref<72x384xf32, #tpu.memory_space<vmem>>, vector<8x384xf32>
    tpu.vector_store %arg13[%c56_82, %c0_83], %85 {strides = array<i32>} : memref<72x384xf32, #tpu.memory_space<vmem>>, vector<8x384xf32>,
    %c0_84 = arith.constant 0 : index
    %c147_85 = arith.constant 147 : index
    %87 = vector.load %arg12[%c0_84, %c147_85] : memref<8x640xf32, #tpu.memory_space<vmem>>, vector<8x384xf32>
    %c64_86 = arith.constant 64 : index
    %c0_87 = arith.constant 0 : index
    %88 = vector.load %arg13[%c64_86, %c0_87] : memref<72x384xf32, #tpu.memory_space<vmem>>, vector<8x384xf32>
    tpu.vector_store %arg13[%c64_86, %c0_87], %87 {strides = array<i32>} : memref<72x384xf32, #tpu.memory_space<vmem>>, vector<8x384xf32>,
    %c0_88 = arith.constant 0 : index
    %c0_89 = arith.constant 0 : index
    %89 = vector.load %arg7[%c0_88, %c0_89] : memref<8x72xf32, #tpu.memory_space<vmem>>, vector<8x72xf32>
    %c0_90 = arith.constant 0 : index
    %c0_91 = arith.constant 0 : index
    %90 = vector.load %arg13[%c0_90, %c0_91] : memref<72x384xf32, #tpu.memory_space<vmem>>, vector<72x384xf32>
    %cst_92 = arith.constant dense<0.000000e+00> : vector<8x384xf32>
    %91 = tpu.matmul %89, %90, %cst_92 {dimension_numbers = #tpu.dot_dimension_numbers<[1], [0], [0], [1], [0, 0, 1, 1], [], []>} : vector<8x72xf32>, vector<72x384xf32>, vector<8x384xf32> -> vector<8x384xf32>
    %c0_93 = arith.constant 0 : index
    %c0_94 = arith.constant 0 : index
    %92 = vector.load %arg8[%c0_93, %c0_94] : memref<8x1xf32, #tpu.memory_space<vmem>>, vector<8x1xf32>
    %93 = vector.broadcast %92 : vector<8x1xf32> to vector<8x384xf32>
    %94 = arith.addf %91, %93 : vector<8x384xf32>
    %95 = vector.broadcast %0 : vector<1x384xf32> to vector<8x384xf32>
    %96 = arith.mulf %94, %95 : vector<8x384xf32>
    %cst_95 = arith.constant dense<0.000000e+00> : vector<8xf32>
    %97 = vector.multi_reduction <add>, %96, %cst_95 [1] : vector<8x384xf32> to vector<8xf32>
    %98 = vector.shape_cast %97 : vector<8xf32> to vector<8x1xf32>
    %cst_96 = arith.constant 3.906250e-03 : f32
    %99 = vector.broadcast %cst_96 : f32 to vector<8x1xf32>
    %100 = arith.mulf %98, %99 : vector<8x1xf32>
    %101 = vector.broadcast %100 : vector<8x1xf32> to vector<8x384xf32>
    %102 = arith.subf %94, %101 : vector<8x384xf32>
    %103 = vector.broadcast %0 : vector<1x384xf32> to vector<8x384xf32>
    %104 = arith.mulf %102, %103 : vector<8x384xf32>
    %105 = arith.mulf %104, %104 : vector<8x384xf32>
    %cst_97 = arith.constant dense<0.000000e+00> : vector<8xf32>
    %106 = vector.multi_reduction <add>, %105, %cst_97 [1] : vector<8x384xf32> to vector<8xf32>
    %107 = vector.shape_cast %106 : vector<8xf32> to vector<8x1xf32>
    %cst_98 = arith.constant 3.906250e-03 : f32
    %108 = vector.broadcast %cst_98 : f32 to vector<8x1xf32>
    %109 = arith.mulf %107, %108 : vector<8x1xf32>
    %110 = vector.broadcast %100 : vector<8x1xf32> to vector<8x384xf32>
    %111 = arith.subf %94, %110 : vector<8x384xf32>
    %cst_99 = arith.constant 9.99999974E-6 : f32
    %112 = vector.broadcast %cst_99 : f32 to vector<8x1xf32>
    %113 = arith.addf %109, %112 : vector<8x1xf32>
    %114 = math.rsqrt %113 : vector<8x1xf32>
    %115 = vector.broadcast %114 : vector<8x1xf32> to vector<8x384xf32>
    %116 = arith.mulf %111, %115 : vector<8x384xf32>
    %c0_100 = arith.constant 0 : index
    %c0_101 = arith.constant 0 : index
    %117 = vector.load %arg9[%c0_100, %c0_101] : memref<8x1xf32, #tpu.memory_space<vmem>>, vector<8x1xf32>
    %118 = vector.broadcast %117 : vector<8x1xf32> to vector<8x384xf32>
    %119 = arith.mulf %118, %116 : vector<8x384xf32>
    %c0_102 = arith.constant 0 : index
    %c0_103 = arith.constant 0 : index
    %120 = vector.load %arg10[%c0_102, %c0_103] : memref<8x1xf32, #tpu.memory_space<vmem>>, vector<8x1xf32>
    %121 = vector.broadcast %120 : vector<8x1xf32> to vector<8x384xf32>
    %122 = arith.addf %119, %121 : vector<8x384xf32>
    %cst_104 = arith.constant 0.000000e+00 : f32
    %123 = vector.broadcast %cst_104 : f32 to vector<8x384xf32>
    %124 = arith.maximumf %122, %123 : vector<8x384xf32>
    %125 = vector.broadcast %0 : vector<1x384xf32> to vector<8x384xf32>
    %126 = arith.mulf %124, %125 : vector<8x384xf32>
    %c0_105 = arith.constant 0 : index
    %c0_106 = arith.constant 0 : index
    %c128_107 = arith.constant 128 : index
    %127 = vector.load %arg1[%c0_105, %c0_106, %c128_107] : memref<1x8x640xf32, #tpu.memory_space<vmem>>, vector<1x8x384xf32>
    %128 = vector.shape_cast %127 : vector<1x8x384xf32> to vector<8x384xf32>
    %129 = arith.addf %128, %126 : vector<8x384xf32>
    %c0_108 = arith.constant 0 : index
    %c0_109 = arith.constant 0 : index
    %c0_110 = arith.constant 0 : index
    %130 = vector.load %arg11[%c0_108, %c0_109, %c0_110] : memref<1x8x384xf32, #tpu.memory_space<vmem>>, vector<1x8x384xf32>
    %131 = vector.shape_cast %130 : vector<1x8x384xf32> to vector<8x384xf32>
    %132 = vector.shape_cast %129 : vector<8x384xf32> to vector<1x8x384xf32>
    tpu.vector_store %arg11[%c0_108, %c0_109, %c0_110], %132 {strides = array<i32>} : memref<1x8x384xf32, #tpu.memory_space<vmem>>, vector<1x8x384xf32>,
    return
  }
  func.func @transform_0(%arg0: i32) -> (i32, i32, i32) {
    %c0_i32 = arith.constant 0 : i32
    %c0_i32_0 = arith.constant 0 : i32
    %c0_i32_1 = arith.constant 0 : i32
    return %arg0, %c0_i32, %c0_i32_0 : i32, i32, i32
  }
  func.func @transform_1(%arg0: i32) -> (i32, i32) {
    %c0_i32 = arith.constant 0 : i32
    %c0_i32_0 = arith.constant 0 : i32
    %c0_i32_1 = arith.constant 0 : i32
    return %c0_i32, %c0_i32_0 : i32, i32
  }
  func.func @transform_2(%arg0: i32) -> (i32, i32) {
    %c0_i32 = arith.constant 0 : i32
    %c0_i32_0 = arith.constant 0 : i32
    %c0_i32_1 = arith.constant 0 : i32
    return %c0_i32, %c0_i32_0 : i32, i32
  }
  func.func @transform_3(%arg0: i32) -> (i32, i32) {
    %c0_i32 = arith.constant 0 : i32
    %c0_i32_0 = arith.constant 0 : i32
    %c0_i32_1 = arith.constant 0 : i32
    return %c0_i32, %c0_i32_0 : i32, i32
  }
  func.func @transform_4(%arg0: i32) -> (i32, i32) {
    %c0_i32 = arith.constant 0 : i32
    %c0_i32_0 = arith.constant 0 : i32
    %c0_i32_1 = arith.constant 0 : i32
    return %c0_i32, %c0_i32_0 : i32, i32
  }
  func.func @transform_5(%arg0: i32) -> (i32, i32) {
    %c0_i32 = arith.constant 0 : i32
    %c0_i32_0 = arith.constant 0 : i32
    %c0_i32_1 = arith.constant 0 : i32
    return %c0_i32, %c0_i32_0 : i32, i32
  }
  func.func @transform_6(%arg0: i32) -> (i32, i32) {
    %c0_i32 = arith.constant 0 : i32
    %c0_i32_0 = arith.constant 0 : i32
    %c0_i32_1 = arith.constant 0 : i32
    return %c0_i32, %c0_i32_0 : i32, i32
  }
  func.func @transform_7(%arg0: i32) -> (i32, i32) {
    %c0_i32 = arith.constant 0 : i32
    %c0_i32_0 = arith.constant 0 : i32
    %c0_i32_1 = arith.constant 0 : i32
    return %c0_i32, %c0_i32_0 : i32, i32
  }
  func.func @transform_8(%arg0: i32) -> (i32, i32) {
    %c0_i32 = arith.constant 0 : i32
    %c0_i32_0 = arith.constant 0 : i32
    %c0_i32_1 = arith.constant 0 : i32
    return %c0_i32, %c0_i32_0 : i32, i32
  }
  func.func @transform_9(%arg0: i32) -> (i32, i32) {
    %c0_i32 = arith.constant 0 : i32
    %c0_i32_0 = arith.constant 0 : i32
    %c0_i32_1 = arith.constant 0 : i32
    return %c0_i32, %c0_i32_0 : i32, i32
  }
  func.func @transform_10(%arg0: i32) -> (i32, i32, i32) {
    %c0_i32 = arith.constant 0 : i32
    %c0_i32_0 = arith.constant 0 : i32
    %c0_i32_1 = arith.constant 0 : i32
    return %arg0, %c0_i32, %c0_i32_0 : i32, i32, i32
  }
}

</mosaic_0001>

<llo_original>
// kernel: tpu_custom_call.1
$region0: #{tpu_custom_call.1}
  #allocation0 [shape = 'u32[]', space=smem, size = 0x4, offset = 0x4, fixed_abs, tag = 'smem constant byte address 0x4 - core index']
  #allocation1 [shape = 'u32[144,128]{1,0:T(1,128)}', space=vmem, size = 0x12000, scoped, tag = 'internal scratch']
  #allocation2 [shape = 'f32[8,640]{1,0:T(8,128)}', space=vmem, size = 0x5000, scoped, tag = 'scratch operand']
  #allocation3 [shape = 'f32[72,384]{1,0:T(8,128)}', space=vmem, size = 0x1b000, scoped, tag = 'scratch operand']
  %s0 = inlined_call_operand.hbm [shape: f32[2,8,640], index: 0, kind: input, shape index: {}]
  %s1 = inlined_call_operand.vmem [shape: f32[1,384], index: 1, kind: input, shape index: {}]
  %s2 = inlined_call_operand.vmem [shape: f32[8,72], index: 2, kind: input, shape index: {}]
  %s3 = inlined_call_operand.vmem [shape: f32[8,1], index: 3, kind: input, shape index: {}]
  %s4 = inlined_call_operand.vmem [shape: f32[8,1], index: 4, kind: input, shape index: {}]
  %s5 = inlined_call_operand.vmem [shape: f32[8,1], index: 5, kind: input, shape index: {}]
  %s6 = inlined_call_operand.vmem [shape: f32[8,72], index: 6, kind: input, shape index: {}]
  %s7 = inlined_call_operand.vmem [shape: f32[8,1], index: 7, kind: input, shape index: {}]
  %s8 = inlined_call_operand.vmem [shape: f32[8,1], index: 8, kind: input, shape index: {}]
  %s9 = inlined_call_operand.vmem [shape: f32[8,1], index: 9, kind: input, shape index: {}]
  %s10 = inlined_call_operand.hbm [shape: f32[2,8,384], index: 10, kind: output, shape index: {}]
  %s11 = sld [smem:[#allocation0]]
  $region77: #{tpu_custom_call.1} parent=0
    _
  %s13 = ssub.s32 1, %s11
  %s14 = scalar_select 0, %s13, %s11
  $region1: #{tpu_custom_call.1} parent=0
    #allocation4 [shape = 'u8[40960]{0}', space=vmem, size = 0xa000, scoped, tag = 'input window, operand 0']
    #allocation5 [shape = 's32[2]{0}', space=sflag, size = 0x8, scoped, tag = 'scoped memory for tpu_custom_call.1']
    #allocation6 [shape = 's32[2]{0}', space=sflag, size = 0x8, scoped, tag = 'scoped memory for tpu_custom_call.1']
    #allocation7 [shape = 'u8[24576]{0}', space=vmem, size = 0x6000, scoped, tag = 'output window, operand 0']
    %15 = vsyncpa [#allocation5], 0
    %s16 = scalar_lea.sflag [#allocation5], 1
    %17 = vsyncpa %s16, 0
    %18 = vsyncpa [#allocation6], 0
    %s19 = scalar_lea.sflag [#allocation6], 1
    %20 = vsyncpa %s19, 0
    loop: start=0, step=1, limit=4
    $region2: #{tpu_custom_call.1} parent=1 // loop_pre_header
      _
    $region3: #{tpu_custom_call.1} parent=1 // loop_header
      %s22 = sphi 0, %s26
      %p23 = scmp.ge.s32.totalorder %s22, 4
      %s32 = sphi 0, %s34
      %s35 = sphi 0, %s32
      %s36 = sphi 0, %s35
      %s52 = sphi 0, %s36
      %s56 = sphi 0, %s56
      %s58 = sphi 0, %s56
      %s59 = sphi 0, %s58
      %s73 = sphi 0, %s59
      %s77 = sphi 0, %s77
      %s79 = sphi 0, %s77
      %s80 = sphi 0, %s79
      %s94 = sphi 0, %s80
      %s98 = sphi 0, %s98
      %s100 = sphi 0, %s98
      %s101 = sphi 0, %s100
      %s115 = sphi 0, %s101
      %s119 = sphi 0, %s119
      %s121 = sphi 0, %s119
      %s122 = sphi 0, %s121
      %s136 = sphi 0, %s122
      %s140 = sphi 0, %s140
      %s142 = sphi 0, %s140
      %s143 = sphi 0, %s142
      %s157 = sphi 0, %s143
      %s161 = sphi 0, %s161
      %s163 = sphi 0, %s161
      %s164 = sphi 0, %s163
      %s178 = sphi 0, %s164
      %s182 = sphi 0, %s182
      %s184 = sphi 0, %s182
      %s185 = sphi 0, %s184
      %s199 = sphi 0, %s185
      %s203 = sphi 0, %s203
      %s205 = sphi 0, %s203
      %s206 = sphi 0, %s205
      %s220 = sphi 0, %s206
      %s224 = sphi 0, %s224
      %s226 = sphi 0, %s224
      %s227 = sphi 0, %s226
      %s241 = sphi 0, %s227
      %s247 = sphi 0, %s249
      %s250 = sphi 0, %s247
      %s251 = sphi 0, %s250
      %s267 = sphi 0, %s251
    $region4: #{tpu_custom_call.1} parent=1 // loop_header_branch
      %25 = sbr.rel (%p23) target = $region8
    $region5: #{tpu_custom_call.1} parent=1 // loop_body
      %s27 = ssub.s32 %s22, 1
      %s28 = ssub.s32 %s22, 2
      %s29 = sadd.s32 %s22, 1
      %s30 = ssub.s32 %s22, %s29
      %p31 = scmp.eq.s32.totalorder %s30, 0
      %s33 = sadd.s32 %s32, 1
      %s34 = scalar_select %p31, %s32, %s33
      %p37 = pneg %p31
      %p38 = scmp.eq.s32.totalorder %s22, 1
      %p39 = por %p37, %p38
      %p40 = scmp.ne.s32.totalorder %s32, %s35
      %p41 = scmp.eq.s32.totalorder %s22, 0
      %p42 = por %p40, %p41
      %p43 = scmp.ne.s32.totalorder %s32, %s35
      %p44 = scmp.eq.s32.totalorder %s27, 1
      %p45 = por %p43, %p44
      %p46 = scmp.ne.s32.totalorder %s35, %s36
      %p47 = scmp.eq.s32.totalorder %s27, 0
      %p48 = por %p46, %p47
      %p49 = scmp.ne.s32.totalorder %s35, %s36
      %p50 = scmp.eq.s32.totalorder %s28, 1
      %p51 = por %p49, %p50
      %p53 = scmp.ne.s32.totalorder %s36, %s52
      %p54 = scmp.eq.s32.totalorder %s28, 0
      %p55 = por %p53, %p54
      %s57 = sadd.s32 %s56, 1
      %p60 = scmp.eq.s32.totalorder %s22, 1
      %p61 = scmp.ne.s32.totalorder %s56, %s58
      %p62 = scmp.eq.s32.totalorder %s22, 0
      %p63 = por %p61, %p62
      %p64 = scmp.ne.s32.totalorder %s56, %s58
      %p65 = scmp.eq.s32.totalorder %s27, 1
      %p66 = por %p64, %p65
      %p67 = scmp.ne.s32.totalorder %s58, %s59
      %p68 = scmp.eq.s32.totalorder %s27, 0
      %p69 = por %p67, %p68
      %p70 = scmp.ne.s32.totalorder %s58, %s59
      %p71 = scmp.eq.s32.totalorder %s28, 1
      %p72 = por %p70, %p71
      %p74 = scmp.ne.s32.totalorder %s59, %s73
      %p75 = scmp.eq.s32.totalorder %s28, 0
      %p76 = por %p74, %p75
      %s78 = sadd.s32 %s77, 1
      %p81 = scmp.eq.s32.totalorder %s22, 1
      %p82 = scmp.ne.s32.totalorder %s77, %s79
      %p83 = scmp.eq.s32.totalorder %s22, 0
      %p84 = por %p82, %p83
      %p85 = scmp.ne.s32.totalorder %s77, %s79
      %p86 = scmp.eq.s32.totalorder %s27, 1
      %p87 = por %p85, %p86
      %p88 = scmp.ne.s32.totalorder %s79, %s80
      %p89 = scmp.eq.s32.totalorder %s27, 0
      %p90 = por %p88, %p89
      %p91 = scmp.ne.s32.totalorder %s79, %s80
      %p92 = scmp.eq.s32.totalorder %s28, 1
      %p93 = por %p91, %p92
      %p95 = scmp.ne.s32.totalorder %s80, %s94
      %p96 = scmp.eq.s32.totalorder %s28, 0
      %p97 = por %p95, %p96
      %s99 = sadd.s32 %s98, 1
      %p102 = scmp.eq.s32.totalorder %s22, 1
      %p103 = scmp.ne.s32.totalorder %s98, %s100
      %p104 = scmp.eq.s32.totalorder %s22, 0
      %p105 = por %p103, %p104
      %p106 = scmp.ne.s32.totalorder %s98, %s100
      %p107 = scmp.eq.s32.totalorder %s27, 1
      %p108 = por %p106, %p107
      %p109 = scmp.ne.s32.totalorder %s100, %s101
      %p110 = scmp.eq.s32.totalorder %s27, 0
      %p111 = por %p109, %p110
      %p112 = scmp.ne.s32.totalorder %s100, %s101
      %p113 = scmp.eq.s32.totalorder %s28, 1
      %p114 = por %p112, %p113
      %p116 = scmp.ne.s32.totalorder %s101, %s115
      %p117 = scmp.eq.s32.totalorder %s28, 0
      %p118 = por %p116, %p117
      %s120 = sadd.s32 %s119, 1
      %p123 = scmp.eq.s32.totalorder %s22, 1
      %p124 = scmp.ne.s32.totalorder %s119, %s121
      %p125 = scmp.eq.s32.totalorder %s22, 0
      %p126 = por %p124, %p125
      %p127 = scmp.ne.s32.totalorder %s119, %s121
      %p128 = scmp.eq.s32.totalorder %s27, 1
      %p129 = por %p127, %p128
      %p130 = scmp.ne.s32.totalorder %s121, %s122
      %p131 = scmp.eq.s32.totalorder %s27, 0
      %p132 = por %p130, %p131
      %p133 = scmp.ne.s32.totalorder %s121, %s122
      %p134 = scmp.eq.s32.totalorder %s28, 1
      %p135 = por %p133, %p134
      %p137 = scmp.ne.s32.totalorder %s122, %s136
      %p138 = scmp.eq.s32.totalorder %s28, 0
      %p139 = por %p137, %p138
      %s141 = sadd.s32 %s140, 1
      %p144 = scmp.eq.s32.totalorder %s22, 1
      %p145 = scmp.ne.s32.totalorder %s140, %s142
      %p146 = scmp.eq.s32.totalorder %s22, 0
      %p147 = por %p145, %p146
      %p148 = scmp.ne.s32.totalorder %s140, %s142
      %p149 = scmp.eq.s32.totalorder %s27, 1
      %p150 = por %p148, %p149
      %p151 = scmp.ne.s32.totalorder %s142, %s143
      %p152 = scmp.eq.s32.totalorder %s27, 0
      %p153 = por %p151, %p152
      %p154 = scmp.ne.s32.totalorder %s142, %s143
      %p155 = scmp.eq.s32.totalorder %s28, 1
      %p156 = por %p154, %p155
      %p158 = scmp.ne.s32.totalorder %s143, %s157
      %p159 = scmp.eq.s32.totalorder %s28, 0
      %p160 = por %p158, %p159
      %s162 = sadd.s32 %s161, 1
      %p165 = scmp.eq.s32.totalorder %s22, 1
      %p166 = scmp.ne.s32.totalorder %s161, %s163
      %p167 = scmp.eq.s32.totalorder %s22, 0
      %p168 = por %p166, %p167
      %p169 = scmp.ne.s32.totalorder %s161, %s163
      %p170 = scmp.eq.s32.totalorder %s27, 1
      %p171 = por %p169, %p170
      %p172 = scmp.ne.s32.totalorder %s163, %s164
      %p173 = scmp.eq.s32.totalorder %s27, 0
      %p174 = por %p172, %p173
      %p175 = scmp.ne.s32.totalorder %s163, %s164
      %p176 = scmp.eq.s32.totalorder %s28, 1
      %p177 = por %p175, %p176
      %p179 = scmp.ne.s32.totalorder %s164, %s178
      %p180 = scmp.eq.s32.totalorder %s28, 0
      %p181 = por %p179, %p180
      %s183 = sadd.s32 %s182, 1
      %p186 = scmp.eq.s32.totalorder %s22, 1
      %p187 = scmp.ne.s32.totalorder %s182, %s184
      %p188 = scmp.eq.s32.totalorder %s22, 0
      %p189 = por %p187, %p188
      %p190 = scmp.ne.s32.totalorder %s182, %s184
      %p191 = scmp.eq.s32.totalorder %s27, 1
      %p192 = por %p190, %p191
      %p193 = scmp.ne.s32.totalorder %s184, %s185
      %p194 = scmp.eq.s32.totalorder %s27, 0
      %p195 = por %p193, %p194
      %p196 = scmp.ne.s32.totalorder %s184, %s185
      %p197 = scmp.eq.s32.totalorder %s28, 1
      %p198 = por %p196, %p197
      %p200 = scmp.ne.s32.totalorder %s185, %s199
      %p201 = scmp.eq.s32.totalorder %s28, 0
      %p202 = por %p200, %p201
      %s204 = sadd.s32 %s203, 1
      %p207 = scmp.eq.s32.totalorder %s22, 1
      %p208 = scmp.ne.s32.totalorder %s203, %s205
      %p209 = scmp.eq.s32.totalorder %s22, 0
      %p210 = por %p208, %p209
      %p211 = scmp.ne.s32.totalorder %s203, %s205
      %p212 = scmp.eq.s32.totalorder %s27, 1
      %p213 = por %p211, %p212
      %p214 = scmp.ne.s32.totalorder %s205, %s206
      %p215 = scmp.eq.s32.totalorder %s27, 0
      %p216 = por %p214, %p215
      %p217 = scmp.ne.s32.totalorder %s205, %s206
      %p218 = scmp.eq.s32.totalorder %s28, 1
      %p219 = por %p217, %p218
      %p221 = scmp.ne.s32.totalorder %s206, %s220
      %p222 = scmp.eq.s32.totalorder %s28, 0
      %p223 = por %p221, %p222
      %s225 = sadd.s32 %s224, 1
      %p228 = scmp.eq.s32.totalorder %s22, 1
      %p229 = scmp.ne.s32.totalorder %s224, %s226
      %p230 = scmp.eq.s32.totalorder %s22, 0
      %p231 = por %p229, %p230
      %p232 = scmp.ne.s32.totalorder %s224, %s226
      %p233 = scmp.eq.s32.totalorder %s27, 1
      %p234 = por %p232, %p233
      %p235 = scmp.ne.s32.totalorder %s226, %s227
      %p236 = scmp.eq.s32.totalorder %s27, 0
      %p237 = por %p235, %p236
      %p238 = scmp.ne.s32.totalorder %s226, %s227
      %p239 = scmp.eq.s32.totalorder %s28, 1
      %p240 = por %p238, %p239
      %p242 = scmp.ne.s32.totalorder %s227, %s241
      %p243 = scmp.eq.s32.totalorder %s28, 0
      %p244 = por %p242, %p243
      %s245 = ssub.s32 %s22, %s29
      %p246 = scmp.eq.s32.totalorder %s245, 0
      %s248 = sadd.s32 %s247, 1
      %s249 = scalar_select %p246, %s247, %s248
      %p252 = pneg %p246
      %p253 = scmp.eq.s32.totalorder %s22, 1
      %p254 = por %p252, %p253
      %p255 = scmp.ne.s32.totalorder %s247, %s250
      %p256 = scmp.eq.s32.totalorder %s22, 0
      %p257 = por %p255, %p256
      %p258 = scmp.ne.s32.totalorder %s247, %s250
      %p259 = scmp.eq.s32.totalorder %s27, 1
      %p260 = por %p258, %p259
      %p261 = scmp.ne.s32.totalorder %s250, %s251
      %p262 = scmp.eq.s32.totalorder %s27, 0
      %p263 = por %p261, %p262
      %p264 = scmp.ne.s32.totalorder %s250, %s251
      %p265 = scmp.eq.s32.totalorder %s28, 1
      %p266 = por %p264, %p265
      %p268 = scmp.ne.s32.totalorder %s251, %s267
      %p269 = scmp.eq.s32.totalorder %s28, 0
      %p270 = por %p268, %p269
      %p271 = scmp.le.s32.totalorder 1, %s22
      %p272 = scmp.lt.s32.totalorder %s22, 3
      %p273 = pnand %p271, %p272
      %p274 = pneg %p273
      // Predicated region
      $region9: #{tpu_custom_call.1} parent=5 // pred_check
        _
      $region10: #{tpu_custom_call.1} parent=5 // pred_check_branch
        %276 = sbr.rel (%p273) target = $region12
      $region11: #{tpu_custom_call.1} parent=5 // pred_region
        %s277 = ssub.s32 %s22, 1
        // Predicated region
        $region13: #{tpu_custom_call.1} parent=11 // pred_check
          %p278 = pneg %p69
        $region14: #{tpu_custom_call.1} parent=11 // pred_check_branch
          %280 = sbr.rel (%p278) target = $region16
        $region15: #{tpu_custom_call.1} parent=11 // pred_region
          _
        $region16: #{tpu_custom_call.1} parent=11 // pred_fallthru
          _
        // Predicated region
        $region17: #{tpu_custom_call.1} parent=11 // pred_check
          %p281 = pneg %p90
        $region18: #{tpu_custom_call.1} parent=11 // pred_check_branch
          %283 = sbr.rel (%p281) target = $region20
        $region19: #{tpu_custom_call.1} parent=11 // pred_region
          _
        $region20: #{tpu_custom_call.1} parent=11 // pred_fallthru
          _
        // Predicated region
        $region21: #{tpu_custom_call.1} parent=11 // pred_check
          %p284 = pneg %p111
        $region22: #{tpu_custom_call.1} parent=11 // pred_check_branch
          %286 = sbr.rel (%p284) target = $region24
        $region23: #{tpu_custom_call.1} parent=11 // pred_region
          _
        $region24: #{tpu_custom_call.1} parent=11 // pred_fallthru
          _
        // Predicated region
        $region25: #{tpu_custom_call.1} parent=11 // pred_check
          %p287 = pneg %p132
        $region26: #{tpu_custom_call.1} parent=11 // pred_check_branch
          %289 = sbr.rel (%p287) target = $region28
        $region27: #{tpu_custom_call.1} parent=11 // pred_region
          _
        $region28: #{tpu_custom_call.1} parent=11 // pred_fallthru
          _
        // Predicated region
        $region29: #{tpu_custom_call.1} parent=11 // pred_check
          %p290 = pneg %p153
        $region30: #{tpu_custom_call.1} parent=11 // pred_check_branch
          %292 = sbr.rel (%p290) target = $region32
        $region31: #{tpu_custom_call.1} parent=11 // pred_region
          _
        $region32: #{tpu_custom_call.1} parent=11 // pred_fallthru
          _
        // Predicated region
        $region33: #{tpu_custom_call.1} parent=11 // pred_check
          %p293 = pneg %p174
        $region34: #{tpu_custom_call.1} parent=11 // pred_check_branch
          %295 = sbr.rel (%p293) target = $region36
        $region35: #{tpu_custom_call.1} parent=11 // pred_region
          _
        $region36: #{tpu_custom_call.1} parent=11 // pred_fallthru
          _
        // Predicated region
        $region37: #{tpu_custom_call.1} parent=11 // pred_check
          %p296 = pneg %p195
        $region38: #{tpu_custom_call.1} parent=11 // pred_check_branch
          %298 = sbr.rel (%p296) target = $region40
        $region39: #{tpu_custom_call.1} parent=11 // pred_region
          _
        $region40: #{tpu_custom_call.1} parent=11 // pred_fallthru
          _
        // Predicated region
        $region41: #{tpu_custom_call.1} parent=11 // pred_check
          %p299 = pneg %p216
        $region42: #{tpu_custom_call.1} parent=11 // pred_check_branch
          %301 = sbr.rel (%p299) target = $region44
        $region43: #{tpu_custom_call.1} parent=11 // pred_region
          _
        $region44: #{tpu_custom_call.1} parent=11 // pred_fallthru
          _
        // Predicated region
        $region45: #{tpu_custom_call.1} parent=11 // pred_check
          %p302 = pneg %p237
        $region46: #{tpu_custom_call.1} parent=11 // pred_check_branch
          %304 = sbr.rel (%p302) target = $region48
        $region47: #{tpu_custom_call.1} parent=11 // pred_region
          _
        $region48: #{tpu_custom_call.1} parent=11 // pred_fallthru
          _
      $region12: #{tpu_custom_call.1} parent=5 // pred_fallthru
        _
      %p305 = scmp.lt.s32.totalorder %s22, 2
      // Predicated region
      $region49: #{tpu_custom_call.1} parent=5 // pred_check
        %p306 = pneg %p305
      $region50: #{tpu_custom_call.1} parent=5 // pred_check_branch
        %308 = sbr.rel (%p306) target = $region52
      $region51: #{tpu_custom_call.1} parent=5 // pred_region
        // Predicated region
        $region53: #{tpu_custom_call.1} parent=51 // pred_check
          %p309 = pneg %p42
        $region54: #{tpu_custom_call.1} parent=51 // pred_check_branch
          %311 = sbr.rel (%p309) target = $region56
        $region55: #{tpu_custom_call.1} parent=51 // pred_region
          %s312 = sand.u32 %s32, 1
          %s313 = scalar_lea.sflag [#allocation5], %s312
          %s314 = sand.u32 %s32, 1
          %s315 = smul.addr %s314, 40
          %s316 = scalar_lea.vmem [#allocation4], %s315
          %s318 = ssub.s32 640, 640
          %319 = vsyncadd %s313, %s318
          %s320 = smul.addr %s22, 5
          %s321 = smul.addr %s320, 128
          %s322 = scalar_lea.hbm %s0, %s321
          %s324 = sshll.u32 %s316, 4
          %s325 = int_to_ptr.vmem [resolvable:$true] %s324
          %327 = dma.hbm_to_vmem [thread:$0]  %s322, 640, %s325, %s313
        $region56: #{tpu_custom_call.1} parent=51 // pred_fallthru
          _
      $region52: #{tpu_custom_call.1} parent=5 // pred_fallthru
        _
      %p328 = scmp.le.s32.totalorder 1, %s22
      %p329 = scmp.lt.s32.totalorder %s22, 3
      %p330 = pnand %p328, %p329
      %p331 = pneg %p330
      // Predicated region
      $region57: #{tpu_custom_call.1} parent=5 // pred_check
        _
      $region58: #{tpu_custom_call.1} parent=5 // pred_check_branch
        %333 = sbr.rel (%p330) target = $region60
      $region59: #{tpu_custom_call.1} parent=5 // pred_region
        %s334 = ssub.s32 %s22, 1
        %s335 = sand.u32 %s35, 1
        %s336 = scalar_lea.sflag [#allocation5], %s335
        %s337 = sand.u32 %s35, 1
        %s338 = smul.addr %s337, 40
        %s339 = scalar_lea.vmem [#allocation4], %s338
        // Predicated region
        $region61: #{tpu_custom_call.1} parent=59 // pred_check
          %p340 = pneg %p48
        $region62: #{tpu_custom_call.1} parent=59 // pred_check_branch
          %342 = sbr.rel (%p340) target = $region64
        $region63: #{tpu_custom_call.1} parent=59 // pred_region
          %343 = dma.done %s336, 640
        $region64: #{tpu_custom_call.1} parent=59 // pred_fallthru
          _
        %s344 = sand.u32 %s35, 1
        %s345 = scalar_lea.sflag [#allocation5], %s344
        %s346 = sand.u32 %s35, 1
        %s347 = smul.addr %s346, 40
        %s348 = scalar_lea.vmem [#allocation4], %s347
        %p349 = pneg %p48
        %p350 = pneg %p45
        %p351 = pneg %p69
        %p352 = pneg %p66
        %p353 = pneg %p90
        %p354 = pneg %p87
        %p355 = pneg %p111
        %p356 = pneg %p108
        %p357 = pneg %p132
        %p358 = pneg %p129
        %p359 = pneg %p153
        %p360 = pneg %p150
        %p361 = pneg %p174
        %p362 = pneg %p171
        %p363 = pneg %p195
        %p364 = pneg %p192
        %p365 = pneg %p216
        %p366 = pneg %p213
        %p367 = pneg %p237
        %p368 = pneg %p234
        %p369 = pneg %p263
        %p370 = pneg %p260
        %s371 = sand.u32 %s250, 1
        %s372 = scalar_lea.sflag [#allocation6], %s371
        %s373 = sand.u32 %s250, 1
        %s374 = smul.addr %s373, 24
        %s375 = scalar_lea.vmem [#allocation7], %s374
        %v376 = vld [vmem:[%s1] sm:$0x7]
        %v377 = vld [vmem:[%s339] sm:$0xff]
        %v378 = vld [vmem:[%s339 + $0x8] sm:$0xff]
        %v379 = vld [vmem:[%s339 + $0x10] sm:$0xff]
        %v380 = vld [vmem:[%s339 + $0x18] sm:$0xff]
        %385 = vrot.lane.b32.xlu0 %v377, 19
        %v386 = vpop.permute.xlu0 %385
        %387 = vrot.lane.b32.xlu0 %v378, 19
        %v388 = vpop.permute.xlu0 %387
        %389 = vrot.lane.b32.xlu0 %v379, 19
        %v390 = vpop.permute.xlu0 %389
        %391 = vrot.lane.b32.xlu0 %v380, 19
        %v392 = vpop.permute.xlu0 %391
        %vm393 = vcmask 154624
        %v394 = vsel %vm393, %v386, %v388
        %v395 = vsel %vm393, %v388, %v390
        %v396 = vsel %vm393, %v390, %v392
        %400 = vst [vmem:[#allocation3] sm:$0xff] %v394
        %401 = vst [vmem:[#allocation3 + $0x8] sm:$0xff] %v395
        %402 = vst [vmem:[#allocation3 + $0x10] sm:$0xff] %v396
        %v403 = vld [vmem:[%s339] sm:$0xff]
        %v404 = vld [vmem:[%s339 + $0x8] sm:$0xff]
        %v405 = vld [vmem:[%s339 + $0x10] sm:$0xff]
        %v406 = vld [vmem:[%s339 + $0x18] sm:$0xff]
        %411 = vrot.lane.b32.xlu0 %v403, 18
        %v412 = vpop.permute.xlu0 %411
        %413 = vrot.lane.b32.xlu0 %v404, 18
        %v414 = vpop.permute.xlu0 %413
        %415 = vrot.lane.b32.xlu0 %v405, 18
        %v416 = vpop.permute.xlu0 %415
        %417 = vrot.lane.b32.xlu0 %v406, 18
        %v418 = vpop.permute.xlu0 %417
        %vm419 = vcmask 146432
        %v420 = vsel %vm419, %v412, %v414
        %v421 = vsel %vm419, %v414, %v416
        %v422 = vsel %vm419, %v416, %v418
        %426 = vst [vmem:[#allocation3 + $0x18] sm:$0xff] %v420
        %427 = vst [vmem:[#allocation3 + $0x20] sm:$0xff] %v421
        %428 = vst [vmem:[#allocation3 + $0x28] sm:$0xff] %v422
        %v429 = vld [vmem:[%s339] sm:$0xff]
        %v430 = vld [vmem:[%s339 + $0x8] sm:$0xff]
        %v431 = vld [vmem:[%s339 + $0x10] sm:$0xff]
        %v432 = vld [vmem:[%s339 + $0x18] sm:$0xff]
        %437 = vrot.lane.b32.xlu0 %v429, 17
        %v438 = vpop.permute.xlu0 %437
        %439 = vrot.lane.b32.xlu0 %v430, 17
        %v440 = vpop.permute.xlu0 %439
        %441 = vrot.lane.b32.xlu0 %v431, 17
        %v442 = vpop.permute.xlu0 %441
        %443 = vrot.lane.b32.xlu0 %v432, 17
        %v444 = vpop.permute.xlu0 %443
        %vm445 = vcmask 138240
        %v446 = vsel %vm445, %v438, %v440
        %v447 = vsel %vm445, %v440, %v442
        %v448 = vsel %vm445, %v442, %v444
        %452 = vst [vmem:[#allocation3 + $0x30] sm:$0xff] %v446
        %453 = vst [vmem:[#allocation3 + $0x38] sm:$0xff] %v447
        %454 = vst [vmem:[#allocation3 + $0x40] sm:$0xff] %v448
        %v455 = vld [vmem:[%s339] sm:$0xff]
        %v456 = vld [vmem:[%s339 + $0x8] sm:$0xff]
        %v457 = vld [vmem:[%s339 + $0x10] sm:$0xff]
        %v458 = vld [vmem:[%s339 + $0x18] sm:$0xff]
        %463 = vrot.lane.b32.xlu0 %v455, 1
        %v464 = vpop.permute.xlu0 %463
        %465 = vrot.lane.b32.xlu0 %v456, 1
        %v466 = vpop.permute.xlu0 %465
        %467 = vrot.lane.b32.xlu0 %v457, 1
        %v468 = vpop.permute.xlu0 %467
        %469 = vrot.lane.b32.xlu0 %v458, 1
        %v470 = vpop.permute.xlu0 %469
        %vm471 = vcmask 7168
        %v472 = vsel %vm471, %v464, %v466
        %v473 = vsel %vm471, %v466, %v468
        %v474 = vsel %vm471, %v468, %v470
        %478 = vst [vmem:[#allocation3 + $0x48] sm:$0xff] %v472
        %479 = vst [vmem:[#allocation3 + $0x50] sm:$0xff] %v473
        %480 = vst [vmem:[#allocation3 + $0x58] sm:$0xff] %v474
        %v481 = vld [vmem:[%s339 + $0x8] sm:$0xff]
        %v482 = vld [vmem:[%s339 + $0x10] sm:$0xff]
        %v483 = vld [vmem:[%s339 + $0x18] sm:$0xff]
        %484 = vst [vmem:[#allocation3 + $0x60] sm:$0xff] %v481
        %485 = vst [vmem:[#allocation3 + $0x68] sm:$0xff] %v482
        %486 = vst [vmem:[#allocation3 + $0x70] sm:$0xff] %v483
        %v487 = vld [vmem:[%s339 + $0x8] sm:$0xff]
        %v488 = vld [vmem:[%s339 + $0x10] sm:$0xff]
        %v489 = vld [vmem:[%s339 + $0x18] sm:$0xff]
        %v490 = vld [vmem:[%s339 + $0x20] sm:$0xff]
        %495 = vrot.lane.b32.xlu0 %v487, 127
        %v496 = vpop.permute.xlu0 %495
        %497 = vrot.lane.b32.xlu0 %v488, 127
        %v498 = vpop.permute.xlu0 %497
        %499 = vrot.lane.b32.xlu0 %v489, 127
        %v500 = vpop.permute.xlu0 %499
        %501 = vrot.lane.b32.xlu0 %v490, 127
        %v502 = vpop.permute.xlu0 %501
        %vm503 = vcmask 1039360
        %v504 = vsel %vm503, %v496, %v498
        %v505 = vsel %vm503, %v498, %v500
        %v506 = vsel %vm503, %v500, %v502
        %510 = vst [vmem:[#allocation3 + $0x78] sm:$0xff] %v504
        %511 = vst [vmem:[#allocation3 + $0x80] sm:$0xff] %v505
        %512 = vst [vmem:[#allocation3 + $0x88] sm:$0xff] %v506
        %v513 = vld [vmem:[%s339 + $0x8] sm:$0xff]
        %v514 = vld [vmem:[%s339 + $0x10] sm:$0xff]
        %v515 = vld [vmem:[%s339 + $0x18] sm:$0xff]
        %v516 = vld [vmem:[%s339 + $0x20] sm:$0xff]
        %521 = vrot.lane.b32.xlu0 %v513, 111
        %v522 = vpop.permute.xlu0 %521
        %523 = vrot.lane.b32.xlu0 %v514, 111
        %v524 = vpop.permute.xlu0 %523
        %525 = vrot.lane.b32.xlu0 %v515, 111
        %v526 = vpop.permute.xlu0 %525
        %527 = vrot.lane.b32.xlu0 %v516, 111
        %v528 = vpop.permute.xlu0 %527
        %vm529 = vcmask 908288
        %v530 = vsel %vm529, %v522, %v524
        %v531 = vsel %vm529, %v524, %v526
        %v532 = vsel %vm529, %v526, %v528
        %536 = vst [vmem:[#allocation3 + $0x90] sm:$0xff] %v530
        %537 = vst [vmem:[#allocation3 + $0x98] sm:$0xff] %v531
        %538 = vst [vmem:[#allocation3 + $0xa0] sm:$0xff] %v532
        %v539 = vld [vmem:[%s339 + $0x8] sm:$0xff]
        %v540 = vld [vmem:[%s339 + $0x10] sm:$0xff]
        %v541 = vld [vmem:[%s339 + $0x18] sm:$0xff]
        %v542 = vld [vmem:[%s339 + $0x20] sm:$0xff]
        %547 = vrot.lane.b32.xlu0 %v539, 110
        %v548 = vpop.permute.xlu0 %547
        %549 = vrot.lane.b32.xlu0 %v540, 110
        %v550 = vpop.permute.xlu0 %549
        %551 = vrot.lane.b32.xlu0 %v541, 110
        %v552 = vpop.permute.xlu0 %551
        %553 = vrot.lane.b32.xlu0 %v542, 110
        %v554 = vpop.permute.xlu0 %553
        %vm555 = vcmask 900096
        %v556 = vsel %vm555, %v548, %v550
        %v557 = vsel %vm555, %v550, %v552
        %v558 = vsel %vm555, %v552, %v554
        %562 = vst [vmem:[#allocation3 + $0xa8] sm:$0xff] %v556
        %563 = vst [vmem:[#allocation3 + $0xb0] sm:$0xff] %v557
        %564 = vst [vmem:[#allocation3 + $0xb8] sm:$0xff] %v558
        %v565 = vld [vmem:[%s339 + $0x8] sm:$0xff]
        %v566 = vld [vmem:[%s339 + $0x10] sm:$0xff]
        %v567 = vld [vmem:[%s339 + $0x18] sm:$0xff]
        %v568 = vld [vmem:[%s339 + $0x20] sm:$0xff]
        %573 = vrot.lane.b32.xlu0 %v565, 109
        %v574 = vpop.permute.xlu0 %573
        %575 = vrot.lane.b32.xlu0 %v566, 109
        %v576 = vpop.permute.xlu0 %575
        %577 = vrot.lane.b32.xlu0 %v567, 109
        %v578 = vpop.permute.xlu0 %577
        %579 = vrot.lane.b32.xlu0 %v568, 109
        %v580 = vpop.permute.xlu0 %579
        %vm581 = vcmask 891904
        %v582 = vsel %vm581, %v574, %v576
        %v583 = vsel %vm581, %v576, %v578
        %v584 = vsel %vm581, %v578, %v580
        %588 = vst [vmem:[#allocation3 + $0xc0] sm:$0xff] %v582
        %589 = vst [vmem:[#allocation3 + $0xc8] sm:$0xff] %v583
        %590 = vst [vmem:[#allocation3 + $0xd0] sm:$0xff] %v584
        %v591 = vld [vmem:[%s2] sm:$0xff]
        %v592 = vld [vmem:[#allocation3] sm:$0xff]
        %v593 = vld [vmem:[#allocation3 + $0x8] sm:$0xff]
        %v594 = vld [vmem:[#allocation3 + $0x10] sm:$0xff]
        %v595 = vld [vmem:[#allocation3 + $0x18] sm:$0xff]
        %v596 = vld [vmem:[#allocation3 + $0x20] sm:$0xff]
        %v597 = vld [vmem:[#allocation3 + $0x28] sm:$0xff]
        %v598 = vld [vmem:[#allocation3 + $0x30] sm:$0xff]
        %v599 = vld [vmem:[#allocation3 + $0x38] sm:$0xff]
        %v600 = vld [vmem:[#allocation3 + $0x40] sm:$0xff]
        %v601 = vld [vmem:[#allocation3 + $0x48] sm:$0xff]
        %v602 = vld [vmem:[#allocation3 + $0x50] sm:$0xff]
        %v603 = vld [vmem:[#allocation3 + $0x58] sm:$0xff]
        %v604 = vld [vmem:[#allocation3 + $0x60] sm:$0xff]
        %v605 = vld [vmem:[#allocation3 + $0x68] sm:$0xff]
        %v606 = vld [vmem:[#allocation3 + $0x70] sm:$0xff]
        %v607 = vld [vmem:[#allocation3 + $0x78] sm:$0xff]
        %v608 = vld [vmem:[#allocation3 + $0x80] sm:$0xff]
        %v609 = vld [vmem:[#allocation3 + $0x88] sm:$0xff]
        %v610 = vld [vmem:[#allocation3 + $0x90] sm:$0xff]
        %v611 = vld [vmem:[#allocation3 + $0x98] sm:$0xff]
        %v612 = vld [vmem:[#allocation3 + $0xa0] sm:$0xff]
        %v613 = vld [vmem:[#allocation3 + $0xa8] sm:$0xff]
        %v614 = vld [vmem:[#allocation3 + $0xb0] sm:$0xff]
        %v615 = vld [vmem:[#allocation3 + $0xb8] sm:$0xff]
        %v616 = vld [vmem:[#allocation3 + $0xc0] sm:$0xff]
        %v617 = vld [vmem:[#allocation3 + $0xc8] sm:$0xff]
        %v618 = vld [vmem:[#allocation3 + $0xd0] sm:$0xff]
        %v619 = vld [vmem:[%s3] sm:$0xff]
        %621 = vset.pattern.permute.xlu0 0
        %622 = vperm.xlu0 %621, %v619
        %v623 = vpop.permute.xlu0 %622
        %vm625 = vcmask 588800
        %v627 = vsel %vm625, %v591, 0
        %629 = vmatprep.subr.mxu0 0.0
        %630 = vmatpush1.msra.mxu0 0.0
        %631 = vmatprep.subr.mxu0 0.0
        %632 = vmatpush1.msra.mxu0 0.0
        %633 = vmatprep.subr.mxu0 0.0
        %634 = vmatpush1.msra.mxu0 0.0
        %635 = vmatprep.subr.mxu0 0.0
        %636 = vmatpush1.msra.mxu0 0.0
        %637 = vmatprep.subr.mxu0 0.0
        %638 = vmatpush1.msra.mxu0 0.0
        %639 = vmatprep.subr.mxu0 0.0
        %640 = vmatpush1.msra.mxu0 0.0
        %641 = vmatprep.subr.mxu0 0.0
        %642 = vmatpush1.msra.mxu0 0.0
        %643 = vmatprep.subr.mxu0 %v617
        %644 = vmatpush1.msra.mxu0 %v616
        %645 = vmatprep.subr.mxu0 %v614
        %646 = vmatpush1.msra.mxu0 %v613
        %647 = vmatprep.subr.mxu0 %v611
        %648 = vmatpush1.msra.mxu0 %v610
        %649 = vmatprep.subr.mxu0 %v608
        %650 = vmatpush1.msra.mxu0 %v607
        %651 = vmatprep.subr.mxu0 %v605
        %652 = vmatpush1.msra.mxu0 %v604
        %653 = vmatprep.subr.mxu0 %v602
        %654 = vmatpush1.msra.mxu0 %v601
        %655 = vmatprep.subr.mxu0 %v599
        %656 = vmatpush1.msra.mxu0 %v598
        %657 = vmatprep.subr.mxu0 %v596
        %658 = vmatpush1.msra.mxu0 %v595
        %659 = vmatprep.subr.mxu0 %v593
        %660 = vmatpush1.msra.mxu0 %v592
        %661 = vmatprep.subr.mxu0 0.0
        %662 = vmatpush2.msra.mxu0 0.0
        %663 = vmatprep.subr.mxu0 0.0
        %664 = vmatpush2.msra.mxu0 0.0
        %665 = vmatprep.subr.mxu0 0.0
        %666 = vmatpush2.msra.mxu0 0.0
        %667 = vmatprep.subr.mxu0 0.0
        %668 = vmatpush2.msra.mxu0 0.0
        %669 = vmatprep.subr.mxu0 0.0
        %670 = vmatpush2.msra.mxu0 0.0
        %671 = vmatprep.subr.mxu0 0.0
        %672 = vmatpush2.msra.mxu0 0.0
        %673 = vmatprep.subr.mxu0 0.0
        %674 = vmatpush2.msra.mxu0 0.0
        %675 = vmatprep.subr.mxu0 0.0
        %676 = vmatpush2.msra.mxu0 0.0
        %677 = vmatprep.subr.mxu0 0.0
        %678 = vmatpush2.msra.mxu0 0.0
        %679 = vmatprep.subr.mxu0 0.0
        %680 = vmatpush2.msra.mxu0 0.0
        %681 = vmatprep.subr.mxu0 0.0
        %682 = vmatpush2.msra.mxu0 0.0
        %683 = vmatprep.subr.mxu0 0.0
        %684 = vmatpush2.msra.mxu0 0.0
        %685 = vmatprep.subr.mxu0 0.0
        %686 = vmatpush2.msra.mxu0 0.0
        %687 = vmatprep.subr.mxu0 0.0
        %688 = vmatpush2.msra.mxu0 0.0
        %689 = vmatprep.subr.mxu0 0.0
        %690 = vmatpush2.msra.mxu0 0.0
        %691 = vmatprep.subr.mxu0 0.0
        %692 = vmatpush2.msra.mxu0 0.0
        %693 = vmatprep.mubr.f32.mxu0 0.0
        %694 = vmatmul.mubr.f32.gmra.mxu0 %v627
        %v695 = vpop.f32.mrf.mxu0
        %v696 = vadd.f32 %v623, %v695
        %v697 = vpop.f32.mrf.mxu0
        %v698 = vadd.f32 %v623, %v697
        %699 = vdwg.mxu0
        %700 = vmatprep.subr.mxu0 0.0
        %701 = vmatpush1.msra.mxu0 0.0
        %702 = vmatprep.subr.mxu0 0.0
        %703 = vmatpush1.msra.mxu0 0.0
        %704 = vmatprep.subr.mxu0 0.0
        %705 = vmatpush1.msra.mxu0 0.0
        %706 = vmatprep.subr.mxu0 0.0
        %707 = vmatpush1.msra.mxu0 0.0
        %708 = vmatprep.subr.mxu0 0.0
        %709 = vmatpush1.msra.mxu0 0.0
        %710 = vmatprep.subr.mxu0 0.0
        %711 = vmatpush1.msra.mxu0 0.0
        %712 = vmatprep.subr.mxu0 0.0
        %713 = vmatpush1.msra.mxu0 0.0
        %714 = vmatprep.subr.mxu0 0.0
        %715 = vmatpush1.msra.mxu0 %v618
        %716 = vmatprep.subr.mxu0 0.0
        %717 = vmatpush1.msra.mxu0 %v615
        %718 = vmatprep.subr.mxu0 0.0
        %719 = vmatpush1.msra.mxu0 %v612
        %720 = vmatprep.subr.mxu0 0.0
        %721 = vmatpush1.msra.mxu0 %v609
        %722 = vmatprep.subr.mxu0 0.0
        %723 = vmatpush1.msra.mxu0 %v606
        %724 = vmatprep.subr.mxu0 0.0
        %725 = vmatpush1.msra.mxu0 %v603
        %726 = vmatprep.subr.mxu0 0.0
        %727 = vmatpush1.msra.mxu0 %v600
        %728 = vmatprep.subr.mxu0 0.0
        %729 = vmatpush1.msra.mxu0 %v597
        %730 = vmatprep.subr.mxu0 0.0
        %731 = vmatpush1.msra.mxu0 %v594
        %732 = vmatprep.subr.mxu0 0.0
        %733 = vmatpush2.msra.mxu0 0.0
        %734 = vmatprep.subr.mxu0 0.0
        %735 = vmatpush2.msra.mxu0 0.0
        %736 = vmatprep.subr.mxu0 0.0
        %737 = vmatpush2.msra.mxu0 0.0
        %738 = vmatprep.subr.mxu0 0.0
        %739 = vmatpush2.msra.mxu0 0.0
        %740 = vmatprep.subr.mxu0 0.0
        %741 = vmatpush2.msra.mxu0 0.0
        %742 = vmatprep.subr.mxu0 0.0
        %743 = vmatpush2.msra.mxu0 0.0
        %744 = vmatprep.subr.mxu0 0.0
        %745 = vmatpush2.msra.mxu0 0.0
        %746 = vmatprep.subr.mxu0 0.0
        %747 = vmatpush2.msra.mxu0 0.0
        %748 = vmatprep.subr.mxu0 0.0
        %749 = vmatpush2.msra.mxu0 0.0
        %750 = vmatprep.subr.mxu0 0.0
        %751 = vmatpush2.msra.mxu0 0.0
        %752 = vmatprep.subr.mxu0 0.0
        %753 = vmatpush2.msra.mxu0 0.0
        %754 = vmatprep.subr.mxu0 0.0
        %755 = vmatpush2.msra.mxu0 0.0
        %756 = vmatprep.subr.mxu0 0.0
        %757 = vmatpush2.msra.mxu0 0.0
        %758 = vmatprep.subr.mxu0 0.0
        %759 = vmatpush2.msra.mxu0 0.0
        %760 = vmatprep.subr.mxu0 0.0
        %761 = vmatpush2.msra.mxu0 0.0
        %762 = vmatprep.subr.mxu0 0.0
        %763 = vmatpush2.msra.mxu0 0.0
        %764 = vmatprep.mubr.f32.mxu0 0.0
        %765 = vmatmul.mubr.f32.gmra.mxu0 %v627
        %v766 = vpop.f32.mrf.mxu0
        %v767 = vadd.f32 %v623, %v766
        %v768 = vpop.f32.mrf.mxu0
        %769 = vdwg.mxu0
        %v771 = vlaneseq
        %v772 = vshrl.u32 %v771, 7
        %v773 = vsub.s32 0, %v772
        %v774 = vrot.slane %v376, %v773
        %v775 = vlaneseq
        %v776 = vshrl.u32 %v775, 7
        %v777 = vsub.s32 1, %v776
        %v778 = vrot.slane %v376, %v777
        %v779 = vlaneseq
        %v780 = vshrl.u32 %v779, 7
        %v781 = vsub.s32 2, %v780
        %v782 = vrot.slane %v376, %v781
        %v786 = vmul.f32 %v696, %v774
        %v787 = vmul.f32 %v698, %v778
        %v788 = vmul.f32 %v767, %v782
        %v789 = vadd.f32 %v786, %v787
        %v790 = vadd.f32 %v789, %v788
        %791 = vadd.xlane.f32.xlu0 %v790
        %v792 = vpop.xlane.xlu0 %791
        %v793 = vmul.f32 %v792, 0.00390625
        %v794 = vsub.f32 %v696, %v793
        %v795 = vsub.f32 %v698, %v793
        %v796 = vsub.f32 %v767, %v793
        %v797 = vmul.f32 %v794, %v774
        %v798 = vmul.f32 %v795, %v778
        %v799 = vmul.f32 %v796, %v782
        %v800 = vmul.f32 %v797, %v797
        %v801 = vmul.f32 %v798, %v798
        %v802 = vmul.f32 %v799, %v799
        %v803 = vadd.f32 %v800, %v801
        %v804 = vadd.f32 %v803, %v802
        %805 = vadd.xlane.f32.xlu0 %v804
        %v806 = vpop.xlane.xlu0 %805
        %v807 = vmul.f32 %v806, 0.00390625
        %v808 = vadd.f32 %v807, 1e-05
        %v809 = vrsqrt.pop %v808
        %v810 = vmul.f32 %v794, %v809
        %v811 = vmul.f32 %v795, %v809
        %v812 = vmul.f32 %v796, %v809
        %v813 = vld [vmem:[%s4] sm:$0xff]
        %815 = vset.pattern.permute.xlu0 0
        %816 = vperm.xlu0 %815, %v813
        %v817 = vpop.permute.xlu0 %816
        %v819 = vmul.f32 %v817, %v810
        %v820 = vmul.f32 %v817, %v811
        %v821 = vmul.f32 %v817, %v812
        %v822 = vld [vmem:[%s5] sm:$0xff]
        %824 = vset.pattern.permute.xlu0 0
        %825 = vperm.xlu0 %824, %v822
        %v826 = vpop.permute.xlu0 %825
        %v828 = vadd.f32 %v819, %v826
        %v829 = vadd.f32 %v820, %v826
        %v830 = vadd.f32 %v821, %v826
        %v831 = vmax.f32 %v828, 0.0
        %v832 = vmax.f32 %v829, 0.0
        %v833 = vmax.f32 %v830, 0.0
        %v834 = vmul.f32 %v831, %v774
        %v835 = vmul.f32 %v832, %v778
        %v836 = vmul.f32 %v833, %v782
        %837 = vst [vmem:[#allocation2] sm:$0xff] 0.0
        %838 = vst [vmem:[#allocation2 + $0x20] sm:$0xff] 0.0
        %839 = vst [vmem:[#allocation2 + $0x8] sm:$0xff] %v834
        %840 = vst [vmem:[#allocation2 + $0x10] sm:$0xff] %v835
        %841 = vst [vmem:[#allocation2 + $0x18] sm:$0xff] %v836
        %v842 = vld [vmem:[#allocation2] sm:$0xff]
        %v843 = vld [vmem:[#allocation2 + $0x8] sm:$0xff]
        %v844 = vld [vmem:[#allocation2 + $0x10] sm:$0xff]
        %v845 = vld [vmem:[#allocation2 + $0x18] sm:$0xff]
        %850 = vrot.lane.b32.xlu0 %v842, 19
        %v851 = vpop.permute.xlu0 %850
        %852 = vrot.lane.b32.xlu0 %v843, 19
        %v853 = vpop.permute.xlu0 %852
        %854 = vrot.lane.b32.xlu0 %v844, 19
        %v855 = vpop.permute.xlu0 %854
        %856 = vrot.lane.b32.xlu0 %v845, 19
        %v857 = vpop.permute.xlu0 %856
        %v858 = vsel %vm393, %v851, %v853
        %v859 = vsel %vm393, %v853, %v855
        %v860 = vsel %vm393, %v855, %v857
        %864 = vst [vmem:[#allocation3] sm:$0xff] %v858
        %865 = vst [vmem:[#allocation3 + $0x8] sm:$0xff] %v859
        %866 = vst [vmem:[#allocation3 + $0x10] sm:$0xff] %v860
        %v867 = vld [vmem:[#allocation2] sm:$0xff]
        %v868 = vld [vmem:[#allocation2 + $0x8] sm:$0xff]
        %v869 = vld [vmem:[#allocation2 + $0x10] sm:$0xff]
        %v870 = vld [vmem:[#allocation2 + $0x18] sm:$0xff]
        %875 = vrot.lane.b32.xlu0 %v867, 18
        %v876 = vpop.permute.xlu0 %875
        %877 = vrot.lane.b32.xlu0 %v868, 18
        %v878 = vpop.permute.xlu0 %877
        %879 = vrot.lane.b32.xlu0 %v869, 18
        %v880 = vpop.permute.xlu0 %879
        %881 = vrot.lane.b32.xlu0 %v870, 18
        %v882 = vpop.permute.xlu0 %881
        %v883 = vsel %vm419, %v876, %v878
        %v884 = vsel %vm419, %v878, %v880
        %v885 = vsel %vm419, %v880, %v882
        %889 = vst [vmem:[#allocation3 + $0x18] sm:$0xff] %v883
        %890 = vst [vmem:[#allocation3 + $0x20] sm:$0xff] %v884
        %891 = vst [vmem:[#allocation3 + $0x28] sm:$0xff] %v885
        %v892 = vld [vmem:[#allocation2] sm:$0xff]
        %v893 = vld [vmem:[#allocation2 + $0x8] sm:$0xff]
        %v894 = vld [vmem:[#allocation2 + $0x10] sm:$0xff]
        %v895 = vld [vmem:[#allocation2 + $0x18] sm:$0xff]
        %900 = vrot.lane.b32.xlu0 %v892, 17
        %v901 = vpop.permute.xlu0 %900
        %902 = vrot.lane.b32.xlu0 %v893, 17
        %v903 = vpop.permute.xlu0 %902
        %904 = vrot.lane.b32.xlu0 %v894, 17
        %v905 = vpop.permute.xlu0 %904
        %906 = vrot.lane.b32.xlu0 %v895, 17
        %v907 = vpop.permute.xlu0 %906
        %v908 = vsel %vm445, %v901, %v903
        %v909 = vsel %vm445, %v903, %v905
        %v910 = vsel %vm445, %v905, %v907
        %914 = vst [vmem:[#allocation3 + $0x30] sm:$0xff] %v908
        %915 = vst [vmem:[#allocation3 + $0x38] sm:$0xff] %v909
        %916 = vst [vmem:[#allocation3 + $0x40] sm:$0xff] %v910
        %v917 = vld [vmem:[#allocation2] sm:$0xff]
        %v918 = vld [vmem:[#allocation2 + $0x8] sm:$0xff]
        %v919 = vld [vmem:[#allocation2 + $0x10] sm:$0xff]
        %v920 = vld [vmem:[#allocation2 + $0x18] sm:$0xff]
        %925 = vrot.lane.b32.xlu0 %v917, 1
        %v926 = vpop.permute.xlu0 %925
        %927 = vrot.lane.b32.xlu0 %v918, 1
        %v928 = vpop.permute.xlu0 %927
        %929 = vrot.lane.b32.xlu0 %v919, 1
        %v930 = vpop.permute.xlu0 %929
        %931 = vrot.lane.b32.xlu0 %v920, 1
        %v932 = vpop.permute.xlu0 %931
        %v933 = vsel %vm471, %v926, %v928
        %v934 = vsel %vm471, %v928, %v930
        %v935 = vsel %vm471, %v930, %v932
        %939 = vst [vmem:[#allocation3 + $0x48] sm:$0xff] %v933
        %940 = vst [vmem:[#allocation3 + $0x50] sm:$0xff] %v934
        %941 = vst [vmem:[#allocation3 + $0x58] sm:$0xff] %v935
        %v942 = vld [vmem:[#allocation2 + $0x8] sm:$0xff]
        %v943 = vld [vmem:[#allocation2 + $0x10] sm:$0xff]
        %v944 = vld [vmem:[#allocation2 + $0x18] sm:$0xff]
        %945 = vst [vmem:[#allocation3 + $0x60] sm:$0xff] %v942
        %946 = vst [vmem:[#allocation3 + $0x68] sm:$0xff] %v943
        %947 = vst [vmem:[#allocation3 + $0x70] sm:$0xff] %v944
        %v948 = vld [vmem:[#allocation2 + $0x8] sm:$0xff]
        %v949 = vld [vmem:[#allocation2 + $0x10] sm:$0xff]
        %v950 = vld [vmem:[#allocation2 + $0x18] sm:$0xff]
        %v951 = vld [vmem:[#allocation2 + $0x20] sm:$0xff]
        %956 = vrot.lane.b32.xlu0 %v948, 127
        %v957 = vpop.permute.xlu0 %956
        %958 = vrot.lane.b32.xlu0 %v949, 127
        %v959 = vpop.permute.xlu0 %958
        %960 = vrot.lane.b32.xlu0 %v950, 127
        %v961 = vpop.permute.xlu0 %960
        %962 = vrot.lane.b32.xlu0 %v951, 127
        %v963 = vpop.permute.xlu0 %962
        %v964 = vsel %vm503, %v957, %v959
        %v965 = vsel %vm503, %v959, %v961
        %v966 = vsel %vm503, %v961, %v963
        %970 = vst [vmem:[#allocation3 + $0x78] sm:$0xff] %v964
        %971 = vst [vmem:[#allocation3 + $0x80] sm:$0xff] %v965
        %972 = vst [vmem:[#allocation3 + $0x88] sm:$0xff] %v966
        %v973 = vld [vmem:[#allocation2 + $0x8] sm:$0xff]
        %v974 = vld [vmem:[#allocation2 + $0x10] sm:$0xff]
        %v975 = vld [vmem:[#allocation2 + $0x18] sm:$0xff]
        %v976 = vld [vmem:[#allocation2 + $0x20] sm:$0xff]
        %981 = vrot.lane.b32.xlu0 %v973, 111
        %v982 = vpop.permute.xlu0 %981
        %983 = vrot.lane.b32.xlu0 %v974, 111
        %v984 = vpop.permute.xlu0 %983
        %985 = vrot.lane.b32.xlu0 %v975, 111
        %v986 = vpop.permute.xlu0 %985
        %987 = vrot.lane.b32.xlu0 %v976, 111
        %v988 = vpop.permute.xlu0 %987
        %v989 = vsel %vm529, %v982, %v984
        %v990 = vsel %vm529, %v984, %v986
        %v991 = vsel %vm529, %v986, %v988
        %995 = vst [vmem:[#allocation3 + $0x90] sm:$0xff] %v989
        %996 = vst [vmem:[#allocation3 + $0x98] sm:$0xff] %v990
        %997 = vst [vmem:[#allocation3 + $0xa0] sm:$0xff] %v991
        %v998 = vld [vmem:[#allocation2 + $0x8] sm:$0xff]
        %v999 = vld [vmem:[#allocation2 + $0x10] sm:$0xff]
        %v1000 = vld [vmem:[#allocation2 + $0x18] sm:$0xff]
        %v1001 = vld [vmem:[#allocation2 + $0x20] sm:$0xff]
        %1006 = vrot.lane.b32.xlu0 %v998, 110
        %v1007 = vpop.permute.xlu0 %1006
        %1008 = vrot.lane.b32.xlu0 %v999, 110
        %v1009 = vpop.permute.xlu0 %1008
        %1010 = vrot.lane.b32.xlu0 %v1000, 110
        %v1011 = vpop.permute.xlu0 %1010
        %1012 = vrot.lane.b32.xlu0 %v1001, 110
        %v1013 = vpop.permute.xlu0 %1012
        %v1014 = vsel %vm555, %v1007, %v1009
        %v1015 = vsel %vm555, %v1009, %v1011
        %v1016 = vsel %vm555, %v1011, %v1013
        %1020 = vst [vmem:[#allocation3 + $0xa8] sm:$0xff] %v1014
        %1021 = vst [vmem:[#allocation3 + $0xb0] sm:$0xff] %v1015
        %1022 = vst [vmem:[#allocation3 + $0xb8] sm:$0xff] %v1016
        %v1023 = vld [vmem:[#allocation2 + $0x8] sm:$0xff]
        %v1024 = vld [vmem:[#allocation2 + $0x10] sm:$0xff]
        %v1025 = vld [vmem:[#allocation2 + $0x18] sm:$0xff]
        %v1026 = vld [vmem:[#allocation2 + $0x20] sm:$0xff]
        %1031 = vrot.lane.b32.xlu0 %v1023, 109
        %v1032 = vpop.permute.xlu0 %1031
        %1033 = vrot.lane.b32.xlu0 %v1024, 109
        %v1034 = vpop.permute.xlu0 %1033
        %1035 = vrot.lane.b32.xlu0 %v1025, 109
        %v1036 = vpop.permute.xlu0 %1035
        %1037 = vrot.lane.b32.xlu0 %v1026, 109
        %v1038 = vpop.permute.xlu0 %1037
        %v1039 = vsel %vm581, %v1032, %v1034
        %v1040 = vsel %vm581, %v1034, %v1036
        %v1041 = vsel %vm581, %v1036, %v1038
        %1045 = vst [vmem:[#allocation3 + $0xc0] sm:$0xff] %v1039
        %1046 = vst [vmem:[#allocation3 + $0xc8] sm:$0xff] %v1040
        %1047 = vst [vmem:[#allocation3 + $0xd0] sm:$0xff] %v1041
        %v1048 = vld [vmem:[%s6] sm:$0xff]
        %v1049 = vld [vmem:[#allocation3] sm:$0xff]
        %v1050 = vld [vmem:[#allocation3 + $0x8] sm:$0xff]
        %v1051 = vld [vmem:[#allocation3 + $0x10] sm:$0xff]
        %v1052 = vld [vmem:[#allocation3 + $0x18] sm:$0xff]
        %v1053 = vld [vmem:[#allocation3 + $0x20] sm:$0xff]
        %v1054 = vld [vmem:[#allocation3 + $0x28] sm:$0xff]
        %v1055 = vld [vmem:[#allocation3 + $0x30] sm:$0xff]
        %v1056 = vld [vmem:[#allocation3 + $0x38] sm:$0xff]
        %v1057 = vld [vmem:[#allocation3 + $0x40] sm:$0xff]
        %v1058 = vld [vmem:[#allocation3 + $0x48] sm:$0xff]
        %v1059 = vld [vmem:[#allocation3 + $0x50] sm:$0xff]
        %v1060 = vld [vmem:[#allocation3 + $0x58] sm:$0xff]
        %v1061 = vld [vmem:[#allocation3 + $0x60] sm:$0xff]
        %v1062 = vld [vmem:[#allocation3 + $0x68] sm:$0xff]
        %v1063 = vld [vmem:[#allocation3 + $0x70] sm:$0xff]
        %v1064 = vld [vmem:[#allocation3 + $0x78] sm:$0xff]
        %v1065 = vld [vmem:[#allocation3 + $0x80] sm:$0xff]
        %v1066 = vld [vmem:[#allocation3 + $0x88] sm:$0xff]
        %v1067 = vld [vmem:[#allocation3 + $0x90] sm:$0xff]
        %v1068 = vld [vmem:[#allocation3 + $0x98] sm:$0xff]
        %v1069 = vld [vmem:[#allocation3 + $0xa0] sm:$0xff]
        %v1070 = vld [vmem:[#allocation3 + $0xa8] sm:$0xff]
        %v1071 = vld [vmem:[#allocation3 + $0xb0] sm:$0xff]
        %v1072 = vld [vmem:[#allocation3 + $0xb8] sm:$0xff]
        %v1073 = vld [vmem:[#allocation3 + $0xc0] sm:$0xff]
        %v1074 = vld [vmem:[#allocation3 + $0xc8] sm:$0xff]
        %v1075 = vld [vmem:[#allocation3 + $0xd0] sm:$0xff]
        %v1076 = vld [vmem:[%s7] sm:$0xff]
        %1078 = vset.pattern.permute.xlu0 0
        %1079 = vperm.xlu0 %1078, %v1076
        %v1080 = vpop.permute.xlu0 %1079
        %v1083 = vsel %vm625, %v1048, 0
        %1085 = vmatprep.subr.mxu0 0.0
        %1086 = vmatpush1.msra.mxu0 0.0
        %1087 = vmatprep.subr.mxu0 0.0
        %1088 = vmatpush1.msra.mxu0 0.0
        %1089 = vmatprep.subr.mxu0 0.0
        %1090 = vmatpush1.msra.mxu0 0.0
        %1091 = vmatprep.subr.mxu0 0.0
        %1092 = vmatpush1.msra.mxu0 0.0
        %1093 = vmatprep.subr.mxu0 0.0
        %1094 = vmatpush1.msra.mxu0 0.0
        %1095 = vmatprep.subr.mxu0 0.0
        %1096 = vmatpush1.msra.mxu0 0.0
        %1097 = vmatprep.subr.mxu0 0.0
        %1098 = vmatpush1.msra.mxu0 0.0
        %1099 = vmatprep.subr.mxu0 %v1074
        %1100 = vmatpush1.msra.mxu0 %v1073
        %1101 = vmatprep.subr.mxu0 %v1071
        %1102 = vmatpush1.msra.mxu0 %v1070
        %1103 = vmatprep.subr.mxu0 %v1068
        %1104 = vmatpush1.msra.mxu0 %v1067
        %1105 = vmatprep.subr.mxu0 %v1065
        %1106 = vmatpush1.msra.mxu0 %v1064
        %1107 = vmatprep.subr.mxu0 %v1062
        %1108 = vmatpush1.msra.mxu0 %v1061
        %1109 = vmatprep.subr.mxu0 %v1059
        %1110 = vmatpush1.msra.mxu0 %v1058
        %1111 = vmatprep.subr.mxu0 %v1056
        %1112 = vmatpush1.msra.mxu0 %v1055
        %1113 = vmatprep.subr.mxu0 %v1053
        %1114 = vmatpush1.msra.mxu0 %v1052
        %1115 = vmatprep.subr.mxu0 %v1050
        %1116 = vmatpush1.msra.mxu0 %v1049
        %1117 = vmatprep.subr.mxu0 0.0
        %1118 = vmatpush2.msra.mxu0 0.0
        %1119 = vmatprep.subr.mxu0 0.0
        %1120 = vmatpush2.msra.mxu0 0.0
        %1121 = vmatprep.subr.mxu0 0.0
        %1122 = vmatpush2.msra.mxu0 0.0
        %1123 = vmatprep.subr.mxu0 0.0
        %1124 = vmatpush2.msra.mxu0 0.0
        %1125 = vmatprep.subr.mxu0 0.0
        %1126 = vmatpush2.msra.mxu0 0.0
        %1127 = vmatprep.subr.mxu0 0.0
        %1128 = vmatpush2.msra.mxu0 0.0
        %1129 = vmatprep.subr.mxu0 0.0
        %1130 = vmatpush2.msra.mxu0 0.0
        %1131 = vmatprep.subr.mxu0 0.0
        %1132 = vmatpush2.msra.mxu0 0.0
        %1133 = vmatprep.subr.mxu0 0.0
        %1134 = vmatpush2.msra.mxu0 0.0
        %1135 = vmatprep.subr.mxu0 0.0
        %1136 = vmatpush2.msra.mxu0 0.0
        %1137 = vmatprep.subr.mxu0 0.0
        %1138 = vmatpush2.msra.mxu0 0.0
        %1139 = vmatprep.subr.mxu0 0.0
        %1140 = vmatpush2.msra.mxu0 0.0
        %1141 = vmatprep.subr.mxu0 0.0
        %1142 = vmatpush2.msra.mxu0 0.0
        %1143 = vmatprep.subr.mxu0 0.0
        %1144 = vmatpush2.msra.mxu0 0.0
        %1145 = vmatprep.subr.mxu0 0.0
        %1146 = vmatpush2.msra.mxu0 0.0
        %1147 = vmatprep.subr.mxu0 0.0
        %1148 = vmatpush2.msra.mxu0 0.0
        %1149 = vmatprep.mubr.f32.mxu0 0.0
        %1150 = vmatmul.mubr.f32.gmra.mxu0 %v1083
        %v1151 = vpop.f32.mrf.mxu0
        %v1152 = vadd.f32 %v1080, %v1151
        %v1153 = vpop.f32.mrf.mxu0
        %v1154 = vadd.f32 %v1080, %v1153
        %1155 = vdwg.mxu0
        %1156 = vmatprep.subr.mxu0 0.0
        %1157 = vmatpush1.msra.mxu0 0.0
        %1158 = vmatprep.subr.mxu0 0.0
        %1159 = vmatpush1.msra.mxu0 0.0
        %1160 = vmatprep.subr.mxu0 0.0
        %1161 = vmatpush1.msra.mxu0 0.0
        %1162 = vmatprep.subr.mxu0 0.0
        %1163 = vmatpush1.msra.mxu0 0.0
        %1164 = vmatprep.subr.mxu0 0.0
        %1165 = vmatpush1.msra.mxu0 0.0
        %1166 = vmatprep.subr.mxu0 0.0
        %1167 = vmatpush1.msra.mxu0 0.0
        %1168 = vmatprep.subr.mxu0 0.0
        %1169 = vmatpush1.msra.mxu0 0.0
        %1170 = vmatprep.subr.mxu0 0.0
        %1171 = vmatpush1.msra.mxu0 %v1075
        %1172 = vmatprep.subr.mxu0 0.0
        %1173 = vmatpush1.msra.mxu0 %v1072
        %1174 = vmatprep.subr.mxu0 0.0
        %1175 = vmatpush1.msra.mxu0 %v1069
        %1176 = vmatprep.subr.mxu0 0.0
        %1177 = vmatpush1.msra.mxu0 %v1066
        %1178 = vmatprep.subr.mxu0 0.0
        %1179 = vmatpush1.msra.mxu0 %v1063
        %1180 = vmatprep.subr.mxu0 0.0
        %1181 = vmatpush1.msra.mxu0 %v1060
        %1182 = vmatprep.subr.mxu0 0.0
        %1183 = vmatpush1.msra.mxu0 %v1057
        %1184 = vmatprep.subr.mxu0 0.0
        %1185 = vmatpush1.msra.mxu0 %v1054
        %1186 = vmatprep.subr.mxu0 0.0
        %1187 = vmatpush1.msra.mxu0 %v1051
        %1188 = vmatprep.subr.mxu0 0.0
        %1189 = vmatpush2.msra.mxu0 0.0
        %1190 = vmatprep.subr.mxu0 0.0
        %1191 = vmatpush2.msra.mxu0 0.0
        %1192 = vmatprep.subr.mxu0 0.0
        %1193 = vmatpush2.msra.mxu0 0.0
        %1194 = vmatprep.subr.mxu0 0.0
        %1195 = vmatpush2.msra.mxu0 0.0
        %1196 = vmatprep.subr.mxu0 0.0
        %1197 = vmatpush2.msra.mxu0 0.0
        %1198 = vmatprep.subr.mxu0 0.0
        %1199 = vmatpush2.msra.mxu0 0.0
        %1200 = vmatprep.subr.mxu0 0.0
        %1201 = vmatpush2.msra.mxu0 0.0
        %1202 = vmatprep.subr.mxu0 0.0
        %1203 = vmatpush2.msra.mxu0 0.0
        %1204 = vmatprep.subr.mxu0 0.0
        %1205 = vmatpush2.msra.mxu0 0.0
        %1206 = vmatprep.subr.mxu0 0.0
        %1207 = vmatpush2.msra.mxu0 0.0
        %1208 = vmatprep.subr.mxu0 0.0
        %1209 = vmatpush2.msra.mxu0 0.0
        %1210 = vmatprep.subr.mxu0 0.0
        %1211 = vmatpush2.msra.mxu0 0.0
        %1212 = vmatprep.subr.mxu0 0.0
        %1213 = vmatpush2.msra.mxu0 0.0
        %1214 = vmatprep.subr.mxu0 0.0
        %1215 = vmatpush2.msra.mxu0 0.0
        %1216 = vmatprep.subr.mxu0 0.0
        %1217 = vmatpush2.msra.mxu0 0.0
        %1218 = vmatprep.subr.mxu0 0.0
        %1219 = vmatpush2.msra.mxu0 0.0
        %1220 = vmatprep.mubr.f32.mxu0 0.0
        %1221 = vmatmul.mubr.f32.gmra.mxu0 %v1083
        %v1222 = vpop.f32.mrf.mxu0
        %v1223 = vadd.f32 %v1080, %v1222
        %v1224 = vpop.f32.mrf.mxu0
        %1225 = vdwg.mxu0
        %v1226 = vmul.f32 %v1152, %v774
        %v1227 = vmul.f32 %v1154, %v778
        %v1228 = vmul.f32 %v1223, %v782
        %v1229 = vadd.f32 %v1226, %v1227
        %v1230 = vadd.f32 %v1229, %v1228
        %1231 = vadd.xlane.f32.xlu0 %v1230
        %v1232 = vpop.xlane.xlu0 %1231
        %v1233 = vmul.f32 %v1232, 0.00390625
        %v1234 = vsub.f32 %v1152, %v1233
        %v1235 = vsub.f32 %v1154, %v1233
        %v1236 = vsub.f32 %v1223, %v1233
        %v1237 = vmul.f32 %v1234, %v774
        %v1238 = vmul.f32 %v1235, %v778
        %v1239 = vmul.f32 %v1236, %v782
        %v1240 = vmul.f32 %v1237, %v1237
        %v1241 = vmul.f32 %v1238, %v1238
        %v1242 = vmul.f32 %v1239, %v1239
        %v1243 = vadd.f32 %v1240, %v1241
        %v1244 = vadd.f32 %v1243, %v1242
        %1245 = vadd.xlane.f32.xlu0 %v1244
        %v1246 = vpop.xlane.xlu0 %1245
        %v1247 = vmul.f32 %v1246, 0.00390625
        %v1248 = vadd.f32 %v1247, 1e-05
        %v1249 = vrsqrt.pop %v1248
        %v1250 = vmul.f32 %v1234, %v1249
        %v1251 = vmul.f32 %v1235, %v1249
        %v1252 = vmul.f32 %v1236, %v1249
        %v1253 = vld [vmem:[%s8] sm:$0xff]
        %1255 = vset.pattern.permute.xlu0 0
        %1256 = vperm.xlu0 %1255, %v1253
        %v1257 = vpop.permute.xlu0 %1256
        %v1259 = vmul.f32 %v1257, %v1250
        %v1260 = vmul.f32 %v1257, %v1251
        %v1261 = vmul.f32 %v1257, %v1252
        %v1262 = vld [vmem:[%s9] sm:$0xff]
        %1264 = vset.pattern.permute.xlu0 0
        %1265 = vperm.xlu0 %1264, %v1262
        %v1266 = vpop.permute.xlu0 %1265
        %v1268 = vadd.f32 %v1259, %v1266
        %v1269 = vadd.f32 %v1260, %v1266
        %v1270 = vadd.f32 %v1261, %v1266
        %v1271 = vmax.f32 %v1268, 0.0
        %v1272 = vmax.f32 %v1269, 0.0
        %v1273 = vmax.f32 %v1270, 0.0
        %v1274 = vmul.f32 %v1271, %v774
        %v1275 = vmul.f32 %v1272, %v778
        %v1276 = vmul.f32 %v1273, %v782
        %v1277 = vld [vmem:[%s339 + $0x8] sm:$0xff]
        %v1278 = vld [vmem:[%s339 + $0x10] sm:$0xff]
        %v1279 = vld [vmem:[%s339 + $0x18] sm:$0xff]
        %v1280 = vadd.f32 %v1277, %v1274
        %v1281 = vadd.f32 %v1278, %v1275
        %v1282 = vadd.f32 %v1279, %v1276
        %1283 = vst [vmem:[%s375] sm:$0xff] %v1280
        %1284 = vst [vmem:[%s375 + $0x8] sm:$0xff] %v1281
        %1285 = vst [vmem:[%s375 + $0x10] sm:$0xff] %v1282
        %s1286 = sand.u32 %s250, 1
        %s1287 = scalar_lea.sflag [#allocation6], %s1286
        %s1288 = sand.u32 %s250, 1
        %s1289 = smul.addr %s1288, 24
        %s1290 = scalar_lea.vmem [#allocation7], %s1289
        // Predicated region
        $region65: #{tpu_custom_call.1} parent=59 // pred_check
          %p1291 = pneg %p260
        $region66: #{tpu_custom_call.1} parent=59 // pred_check_branch
          %1293 = sbr.rel (%p1291) target = $region68
        $region67: #{tpu_custom_call.1} parent=59 // pred_region
          %s1295 = ssub.s32 384, 384
          %1296 = vsyncadd %s1287, %s1295
          %s1297 = smul.addr %s27, 3
          %s1298 = smul.addr %s1297, 128
          %s1299 = scalar_lea.hbm %s10, %s1298
          %s1301 = sshll.u32 %s1290, 4
          %s1302 = int_to_ptr.vmem [resolvable:$true] %s1301
          %1304 = dma.vmem_to_hbm [thread:$0]  %s1302, 384, %s1299, %s1287
        $region68: #{tpu_custom_call.1} parent=59 // pred_fallthru
          _
      $region60: #{tpu_custom_call.1} parent=5 // pred_fallthru
        _
      %p1305 = scmp.le.s32.totalorder 2, %s22
      // Predicated region
      $region69: #{tpu_custom_call.1} parent=5 // pred_check
        %p1306 = pneg %p1305
      $region70: #{tpu_custom_call.1} parent=5 // pred_check_branch
        %1308 = sbr.rel (%p1306) target = $region72
      $region71: #{tpu_custom_call.1} parent=5 // pred_region
        %s1309 = ssub.s32 %s22, 2
        // Predicated region
        $region73: #{tpu_custom_call.1} parent=71 // pred_check
          %p1310 = pneg %p266
        $region74: #{tpu_custom_call.1} parent=71 // pred_check_branch
          %1312 = sbr.rel (%p1310) target = $region76
        $region75: #{tpu_custom_call.1} parent=71 // pred_region
          %s1313 = sand.u32 %s251, 1
          %s1314 = scalar_lea.sflag [#allocation6], %s1313
          %s1315 = sand.u32 %s251, 1
          %s1316 = smul.addr %s1315, 24
          %s1317 = scalar_lea.vmem [#allocation7], %s1316
          %1318 = dma.done %s1314, 384
        $region76: #{tpu_custom_call.1} parent=71 // pred_fallthru
          _
      $region72: #{tpu_custom_call.1} parent=5 // pred_fallthru
        _
    $region6: #{tpu_custom_call.1} parent=1 // loop_footer
      %s26 = sadd.s32 1, %s22
    $region7: #{tpu_custom_call.1} parent=1 // loop_footer_branch
      %21 = sbr.rel target = $region3
    $region8: #{tpu_custom_call.1} parent=1 // loop_exit
      _
    %1319 = vsyncpa [#allocation5], 1
    %s1320 = scalar_lea.sflag [#allocation5], 1
    %1321 = vsyncpa %s1320, 1
    %1322 = vsyncpa [#allocation6], 1
    %s1323 = scalar_lea.sflag [#allocation6], 1
    %1324 = vsyncpa %s1323, 1

</llo_original>
